<compile_context>
chip_gen: v5e
topology: v5e:2x2
jax: 0.10.0
libtpu: 0.0.40
codegen_flags: <defaults>
</compile_context>

<pallas_src>
import jax
import jax.numpy as jnp
from jax.experimental import pallas as pl
from jax.experimental.pallas import tpu as pltpu


def _round_up(x, m):
    return (x + m - 1) // m * m


def _cdiv(a, b):
    return (a + b - 1) // b


def _choose_tiling(batch, tm_max, min_grid_steps=4):
    """Pick (tm, n_tiles, b_pad) for the batch grid.

    * minimal tail padding: tm is derived from the tile count, so the last tile
      wastes at most 7 rows (sublane rounding), not up to tm-8 rows,
    * >= `min_grid_steps` grid steps whenever the batch allows it (v7x 2-TC
      occupancy + >=2 pipeline steps to overlap x-tile DMA with compute),
    * tm bounded by tm_max (per-step VMEM / overhead knob).
    """
    b8 = _round_up(batch, 8)
    n_tiles = max(_cdiv(b8, tm_max), min(min_grid_steps, b8 // 8), 1)
    tm = _round_up(_cdiv(b8, n_tiles), 8)
    n_tiles = _cdiv(b8, tm)
    return tm, n_tiles, n_tiles * tm


def mlp_kernel(x_ref, w1_ref, b1_ref, w2_ref, b2_ref, w3_ref, b3_ref, o_ref):
    # Layer 1: Linear(784 -> 512) + ReLU.  bf16 operands on the MXU, f32
    # accumulation; bias-add + ReLU in bf16 so the result feeds the next MXU
    # pass directly (no separate cast pass, half the activation-slab traffic).
    h1 = jnp.dot(x_ref[...], w1_ref[...], preferred_element_type=jnp.float32)
    h1 = jnp.maximum(h1.astype(jnp.bfloat16) + b1_ref[...], 0)
    # Layer 2: Linear(512 -> 512) + ReLU.
    h2 = jnp.dot(h1, w2_ref[...], preferred_element_type=jnp.float32)
    h2 = jnp.maximum(h2.astype(jnp.bfloat16) + b2_ref[...], 0)
    # Layer 3: Linear(512 -> 2, lane-padded to 128) -> logits, no activation.
    logits = jnp.dot(h2, w3_ref[...], preferred_element_type=jnp.float32)
    o_ref[...] = (logits + b3_ref[...]).astype(o_ref.dtype)


def mlp_forward(x, params, *, out_features=2, tm_max=1024):
    """x: [batch, ...] (trailing dims flattened like nn.Flatten).

    params: kernel params (w1[784,512] bf16, b1[1,512] bf16, w2[512,512] bf16,
            b2[1,512] bf16, w3[512,128] bf16 (lane-padded), b3[1,128] f32).
    Runs the MXU in bf16 with f32 accumulation (intentional precision tradeoff).
    """
    w1, b1, w2, b2, w3, b3 = params
    batch = x.shape[0]
    x2d = x.reshape(batch, -1).astype(jnp.bfloat16)
    in_features = x2d.shape[1]
    assert in_features == w1.shape[0], (in_features, w1.shape)

    hidden = w1.shape[1]     # 512
    n_pad = w3.shape[1]      # 128 (lane-dense padded logits)

    tm, n_tiles, b_pad = _choose_tiling(batch, tm_max)

    # Only batch-row padding (zero rows), and only when needed -- no K padding,
    # no full activation rewrite in HBM when batch already divides evenly.
    if b_pad != batch:
        x2d = jnp.pad(x2d, ((0, b_pad - batch), (0, 0)))

    grid = (n_tiles,)

    flops = 2 * b_pad * (in_features * hidden + hidden * hidden + hidden * n_pad)
    bytes_accessed = (
        x2d.size * 2                                    # bf16 activations in
        + (w1.size + w2.size + w3.size) * 2             # bf16 weights (resident)
        + (b1.size + b2.size) * 2 + b3.size * 4         # biases
        + b_pad * n_pad * 4)                            # f32 logits out

    out = pl.pallas_call(
        mlp_kernel,
        out_shape=jax.ShapeDtypeStruct((b_pad, n_pad), jnp.float32),
        grid_spec=pltpu.PrefetchScalarGridSpec(
            num_scalar_prefetch=0,
            grid=grid,
            in_specs=[
                pl.BlockSpec((tm, in_features), lambda i: (i, 0)),   # x batch tile
                pl.BlockSpec((in_features, hidden), lambda i: (0, 0)),  # w1 resident
                pl.BlockSpec((1, hidden), lambda i: (0, 0)),         # b1 resident
                pl.BlockSpec((hidden, hidden), lambda i: (0, 0)),    # w2 resident
                pl.BlockSpec((1, hidden), lambda i: (0, 0)),         # b2 resident
                pl.BlockSpec((hidden, n_pad), lambda i: (0, 0)),     # w3 resident
                pl.BlockSpec((1, n_pad), lambda i: (0, 0)),          # b3 resident
            ],
            out_specs=pl.BlockSpec((tm, n_pad), lambda i: (i, 0)),
        ),
        compiler_params=pltpu.CompilerParams(
            dimension_semantics=("parallel",),
            vmem_limit_bytes=32 * 1024 * 1024),
        cost_estimate=pl.CostEstimate(
            flops=flops, transcendentals=0, bytes_accessed=bytes_accessed),
    )(x2d, w1, b1, w2, b2, w3, b3)

    # Strip batch padding and the lane padding of the final layer.
    return out[:batch, :out_features]


def init_mlp_params(key, input_size, hidden=512, out=2):
    """nn.Linear-style U(-1/sqrt(fan_in), 1/sqrt(fan_in)) init.

    Returns (kernel_params, ref_params):
      kernel_params: bf16 weights, bf16 biases (layers 1-2), f32 bias (layer 3,
                     lane-padded) for the Pallas kernel.
      ref_params:    unpadded f32 weights/biases for the pure-JAX reference.
    """
    def linear(k, fan_in, fan_out):
        kw, kb = jax.random.split(k)
        bound = 1.0 / jnp.sqrt(float(fan_in))
        w = jax.random.uniform(kw, (fan_in, fan_out), jnp.float32, -bound, bound)
        b = jax.random.uniform(kb, (1, fan_out), jnp.float32, -bound, bound)
        return w, b

    k1, k2, k3 = jax.random.split(key, 3)
    w1, b1 = linear(k1, input_size, hidden)
    w2, b2 = linear(k2, hidden, hidden)
    w3, b3 = linear(k3, hidden, out)

    n_pad = _round_up(out, 128)          # 2 -> 128 (lane-dense output store)

    w1p = w1.astype(jnp.bfloat16)        # unpadded [784, 512]
    b1p = b1.astype(jnp.bfloat16)
    w2p = w2.astype(jnp.bfloat16)
    b2p = b2.astype(jnp.bfloat16)
    w3p = jnp.zeros((hidden, n_pad), jnp.bfloat16).at[:, :out].set(
        w3.astype(jnp.bfloat16))
    b3p = jnp.zeros((1, n_pad), jnp.float32).at[:, :out].set(b3)

    kernel_params = (w1p, b1p, w2p, b2p, w3p, b3p)
    ref_params = (w1, b1, w2, b2, w3, b3)
    return kernel_params, ref_params


if __name__ == "__main__":
    key = jax.random.PRNGKey(0)
    kx, kp = jax.random.split(key)

    # Small example consistent with the module: batch of 28x28 images.
    # batch=10 exercises both the tail-padding path (10 -> 16 rows) and a
    # multi-tile grid (2 steps of tm=8) with VMEM-resident weights.
    batch, H, W = 10, 28, 28
    input_size = H * W  # 784
    x = jax.random.uniform(kx, (batch, H, W), jnp.float32)

    kernel_params, ref_params = init_mlp_params(kp, input_size)

    logits = mlp_forward(x, kernel_params)
    jax.block_until_ready(logits)
    assert logits.shape == (batch, 2)

    # Reference 1: same math as the kernel (bf16 operands, f32 MXU accumulate,
    # bf16 bias-add/ReLU epilogue, f32 final bias-add).
    w1, b1, w2, b2, w3, b3 = ref_params
    xf = x.reshape(batch, -1)

    def bf(a):
        return a.astype(jnp.bfloat16)

    r = jnp.maximum(
        jnp.dot(bf(xf), bf(w1), preferred_element_type=jnp.float32)
        .astype(jnp.bfloat16) + bf(b1), 0)
    r = jnp.maximum(
        jnp.dot(r, bf(w2), preferred_element_type=jnp.float32)
        .astype(jnp.bfloat16) + bf(b2), 0)
    ref_bf16 = jnp.dot(r, bf(w3), preferred_element_type=jnp.float32) + b3
    assert jnp.allclose(logits, ref_bf16, atol=5e-3, rtol=5e-3), (
        jnp.max(jnp.abs(logits - ref_bf16)))

    # Reference 2: pure f32 forward (original module semantics), looser
    # tolerance since the kernel runs the MXU / epilogue in bf16.
    ref_f32 = jnp.maximum(xf @ w1 + b1, 0.0)
    ref_f32 = jnp.maximum(ref_f32 @ w2 + b2, 0.0)
    ref_f32 = ref_f32 @ w3 + b3
    assert jnp.allclose(logits, ref_f32, atol=5e-2, rtol=5e-2), (
        jnp.max(jnp.abs(logits - ref_f32)))

    print("KERNEL_OK")
</pallas_src>

<mosaic_0001>
module attributes {stable_mosaic.version = 11 : i64} {
  func.func @mlp_kernel(%arg0: i32, %arg1: memref<8x784xbf16, #tpu.memory_space<vmem>>, %arg2: memref<784x512xbf16, #tpu.memory_space<vmem>>, %arg3: memref<1x512xbf16, #tpu.memory_space<vmem>>, %arg4: memref<512x512xbf16, #tpu.memory_space<vmem>>, %arg5: memref<1x512xbf16, #tpu.memory_space<vmem>>, %arg6: memref<512x128xbf16, #tpu.memory_space<vmem>>, %arg7: memref<1x128xf32, #tpu.memory_space<vmem>>, %arg8: memref<8x128xf32, #tpu.memory_space<vmem>>) attributes {dimension_semantics = [#tpu.dimension_semantics<parallel>], iteration_bounds = array<i64: 2>, scalar_prefetch = 0 : i64, scratch_operands = 0 : i64, tpu.core_type = #tpu.core_type<tc>, window_params = [{transform_indices = @transform_0, window_bounds = array<i64: 8, 784>}, {pipeline_mode = #tpu.pipeline_mode<synchronous>, transform_indices = @transform_1, window_bounds = array<i64: 784, 512>}, {pipeline_mode = #tpu.pipeline_mode<synchronous>, transform_indices = @transform_2, window_bounds = array<i64: 1, 512>}, {pipeline_mode = #tpu.pipeline_mode<synchronous>, transform_indices = @transform_3, window_bounds = array<i64: 512, 512>}, {pipeline_mode = #tpu.pipeline_mode<synchronous>, transform_indices = @transform_4, window_bounds = array<i64: 1, 512>}, {pipeline_mode = #tpu.pipeline_mode<synchronous>, transform_indices = @transform_5, window_bounds = array<i64: 512, 128>}, {pipeline_mode = #tpu.pipeline_mode<synchronous>, transform_indices = @transform_6, window_bounds = array<i64: 1, 128>}, {transform_indices = @transform_7, window_bounds = array<i64: 8, 128>}]} {
    %c0 = arith.constant 0 : index
    %c0_0 = arith.constant 0 : index
    %0 = vector.load %arg1[%c0, %c0_0] : memref<8x784xbf16, #tpu.memory_space<vmem>>, vector<8x784xbf16>
    %c0_1 = arith.constant 0 : index
    %c0_2 = arith.constant 0 : index
    %1 = vector.load %arg2[%c0_1, %c0_2] : memref<784x512xbf16, #tpu.memory_space<vmem>>, vector<784x512xbf16>
    %cst = arith.constant dense<0.000000e+00> : vector<8x512xf32>
    %2 = tpu.matmul %0, %1, %cst {dimension_numbers = #tpu.dot_dimension_numbers<[1], [0], [0], [1], [0, 0, 1, 1], [], []>} : vector<8x784xbf16>, vector<784x512xbf16>, vector<8x512xf32> -> vector<8x512xf32>
    %3 = arith.truncf %2 : vector<8x512xf32> to vector<8x512xbf16>
    %c0_3 = arith.constant 0 : index
    %c0_4 = arith.constant 0 : index
    %4 = vector.load %arg3[%c0_3, %c0_4] : memref<1x512xbf16, #tpu.memory_space<vmem>>, vector<1x512xbf16>
    %5 = vector.broadcast %4 : vector<1x512xbf16> to vector<8x512xbf16>
    %6 = arith.addf %3, %5 : vector<8x512xbf16>
    %cst_5 = arith.constant 0.000000e+00 : bf16
    %7 = vector.broadcast %cst_5 : bf16 to vector<8x512xbf16>
    %8 = arith.maximumf %6, %7 : vector<8x512xbf16>
    %c0_6 = arith.constant 0 : index
    %c0_7 = arith.constant 0 : index
    %9 = vector.load %arg4[%c0_6, %c0_7] : memref<512x512xbf16, #tpu.memory_space<vmem>>, vector<512x512xbf16>
    %cst_8 = arith.constant dense<0.000000e+00> : vector<8x512xf32>
    %10 = tpu.matmul %8, %9, %cst_8 {dimension_numbers = #tpu.dot_dimension_numbers<[1], [0], [0], [1], [0, 0, 1, 1], [], []>} : vector<8x512xbf16>, vector<512x512xbf16>, vector<8x512xf32> -> vector<8x512xf32>
    %11 = arith.truncf %10 : vector<8x512xf32> to vector<8x512xbf16>
    %c0_9 = arith.constant 0 : index
    %c0_10 = arith.constant 0 : index
    %12 = vector.load %arg5[%c0_9, %c0_10] : memref<1x512xbf16, #tpu.memory_space<vmem>>, vector<1x512xbf16>
    %13 = vector.broadcast %12 : vector<1x512xbf16> to vector<8x512xbf16>
    %14 = arith.addf %11, %13 : vector<8x512xbf16>
    %cst_11 = arith.constant 0.000000e+00 : bf16
    %15 = vector.broadcast %cst_11 : bf16 to vector<8x512xbf16>
    %16 = arith.maximumf %14, %15 : vector<8x512xbf16>
    %c0_12 = arith.constant 0 : index
    %c0_13 = arith.constant 0 : index
    %17 = vector.load %arg6[%c0_12, %c0_13] : memref<512x128xbf16, #tpu.memory_space<vmem>>, vector<512x128xbf16>
    %cst_14 = arith.constant dense<0.000000e+00> : vector<8x128xf32>
    %18 = tpu.matmul %16, %17, %cst_14 {dimension_numbers = #tpu.dot_dimension_numbers<[1], [0], [0], [1], [0, 0, 1, 1], [], []>} : vector<8x512xbf16>, vector<512x128xbf16>, vector<8x128xf32> -> vector<8x128xf32>
    %c0_15 = arith.constant 0 : index
    %c0_16 = arith.constant 0 : index
    %19 = vector.load %arg7[%c0_15, %c0_16] : memref<1x128xf32, #tpu.memory_space<vmem>>, vector<1x128xf32>
    %20 = vector.broadcast %19 : vector<1x128xf32> to vector<8x128xf32>
    %21 = arith.addf %18, %20 : vector<8x128xf32>
    %c0_17 = arith.constant 0 : index
    %c0_18 = arith.constant 0 : index
    %22 = vector.load %arg8[%c0_17, %c0_18] : memref<8x128xf32, #tpu.memory_space<vmem>>, vector<8x128xf32>
    tpu.vector_store %arg8[%c0_17, %c0_18], %21 {strides = array<i32>} : memref<8x128xf32, #tpu.memory_space<vmem>>, vector<8x128xf32>,
    return
  }
  func.func @transform_0(%arg0: i32) -> (i32, i32) {
    %c0_i32 = arith.constant 0 : i32
    %c0_i32_0 = arith.constant 0 : i32
    return %arg0, %c0_i32 : i32, i32
  }
  func.func @transform_1(%arg0: i32) -> (i32, i32) {
    %c0_i32 = arith.constant 0 : i32
    %c0_i32_0 = arith.constant 0 : i32
    %c0_i32_1 = arith.constant 0 : i32
    return %c0_i32, %c0_i32_0 : i32, i32
  }
  func.func @transform_2(%arg0: i32) -> (i32, i32) {
    %c0_i32 = arith.constant 0 : i32
    %c0_i32_0 = arith.constant 0 : i32
    %c0_i32_1 = arith.constant 0 : i32
    return %c0_i32, %c0_i32_0 : i32, i32
  }
  func.func @transform_3(%arg0: i32) -> (i32, i32) {
    %c0_i32 = arith.constant 0 : i32
    %c0_i32_0 = arith.constant 0 : i32
    %c0_i32_1 = arith.constant 0 : i32
    return %c0_i32, %c0_i32_0 : i32, i32
  }
  func.func @transform_4(%arg0: i32) -> (i32, i32) {
    %c0_i32 = arith.constant 0 : i32
    %c0_i32_0 = arith.constant 0 : i32
    %c0_i32_1 = arith.constant 0 : i32
    return %c0_i32, %c0_i32_0 : i32, i32
  }
  func.func @transform_5(%arg0: i32) -> (i32, i32) {
    %c0_i32 = arith.constant 0 : i32
    %c0_i32_0 = arith.constant 0 : i32
    %c0_i32_1 = arith.constant 0 : i32
    return %c0_i32, %c0_i32_0 : i32, i32
  }
  func.func @transform_6(%arg0: i32) -> (i32, i32) {
    %c0_i32 = arith.constant 0 : i32
    %c0_i32_0 = arith.constant 0 : i32
    %c0_i32_1 = arith.constant 0 : i32
    return %c0_i32, %c0_i32_0 : i32, i32
  }
  func.func @transform_7(%arg0: i32) -> (i32, i32) {
    %c0_i32 = arith.constant 0 : i32
    %c0_i32_0 = arith.constant 0 : i32
    return %arg0, %c0_i32 : i32, i32
  }
}

</mosaic_0001>

<llo_original>
// kernel: tpu_custom_call.1
$region0: #{tpu_custom_call.1}
  #allocation0 [shape = 'u32[]', space=smem, size = 0x4, offset = 0x4, fixed_abs, tag = 'smem constant byte address 0x4 - core index']
  #allocation1 [shape = 'u32[72,128]{1,0:T(1,128)}', space=vmem, size = 0x9000, scoped, tag = 'internal scratch']
  %s0 = inlined_call_operand.hbm [shape: bf16[16,784], index: 0, kind: input, shape index: {}]
  %s1 = inlined_call_operand.hbm [shape: bf16[784,512], index: 1, kind: input, shape index: {}]
  %s2 = inlined_call_operand.hbm [shape: bf16[1,512], index: 2, kind: input, shape index: {}]
  %s3 = inlined_call_operand.hbm [shape: bf16[512,512], index: 3, kind: input, shape index: {}]
  %s4 = inlined_call_operand.hbm [shape: bf16[1,512], index: 4, kind: input, shape index: {}]
  %s5 = inlined_call_operand.hbm [shape: bf16[512,128], index: 5, kind: input, shape index: {}]
  %s6 = inlined_call_operand.vmem [shape: f32[1,128], index: 6, kind: input, shape index: {}]
  %s7 = inlined_call_operand.hbm [shape: f32[16,128], index: 7, kind: output, shape index: {}]
  %s8 = sld [smem:[#allocation0]]
  $region85: #{tpu_custom_call.1} parent=0
    _
  %s10 = ssub.s32 1, %s8
  %s11 = scalar_select 0, %s10, %s8
  $region1: #{tpu_custom_call.1} parent=0
    #allocation2 [shape = 'u8[28672]{0}', space=vmem, size = 0x7000, scoped, tag = 'input window, operand 0']
    #allocation3 [shape = 's32[2]{0}', space=sflag, size = 0x8, scoped, tag = 'scoped memory for tpu_custom_call.1']
    #allocation4 [shape = 's32[2]{0}', space=sflag, size = 0x8, scoped, tag = 'scoped memory for tpu_custom_call.1']
    #allocation5 [shape = 'u8[802816]{0}', space=vmem, size = 0xc4000, scoped, tag = 'input window, operand 1, single buffered']
    #allocation6 [shape = 's32[1]{0}', space=sflag, size = 0x4, scoped, tag = 'scoped memory for tpu_custom_call.1']
    #allocation7 [shape = 'u8[2048]{0}', space=vmem, size = 0x800, scoped, tag = 'input window, operand 2, single buffered']
    #allocation8 [shape = 'u8[524288]{0}', space=vmem, size = 0x80000, scoped, tag = 'input window, operand 3, single buffered']
    #allocation9 [shape = 's32[1]{0}', space=sflag, size = 0x4, scoped, tag = 'scoped memory for tpu_custom_call.1']
    #allocation10 [shape = 'u8[2048]{0}', space=vmem, size = 0x800, scoped, tag = 'input window, operand 4, single buffered']
    #allocation11 [shape = 'u8[131072]{0}', space=vmem, size = 0x20000, scoped, tag = 'input window, operand 5, single buffered']
    #allocation12 [shape = 's32[1]{0}', space=sflag, size = 0x4, scoped, tag = 'scoped memory for tpu_custom_call.1']
    #allocation13 [shape = 'u8[8192]{0}', space=vmem, size = 0x2000, scoped, tag = 'output window, operand 0']
    %12 = vsyncpa [#allocation3], 0
    %s13 = scalar_lea.sflag [#allocation3], 1
    %14 = vsyncpa %s13, 0
    %15 = vsyncpa [#allocation6], 0
    %16 = vsyncpa [#allocation9], 0
    %17 = vsyncpa [#allocation12], 0
    %18 = vsyncpa [#allocation4], 0
    %s19 = scalar_lea.sflag [#allocation4], 1
    %20 = vsyncpa %s19, 0
    loop: start=0, step=1, limit=4
    $region2: #{tpu_custom_call.1} parent=1 // loop_pre_header
      _
    $region3: #{tpu_custom_call.1} parent=1 // loop_header
      %s22 = sphi 0, %s26
      %p23 = scmp.ge.s32.totalorder %s22, 4
      %s32 = sphi 0, %s34
      %s35 = sphi 0, %s32
      %s36 = sphi 0, %s35
      %s52 = sphi 0, %s36
      %s56 = sphi 0, %s56
      %s58 = sphi 0, %s56
      %s59 = sphi 0, %s58
      %s73 = sphi 0, %s59
      %s77 = sphi 0, %s77
      %s79 = sphi 0, %s77
      %s80 = sphi 0, %s79
      %s94 = sphi 0, %s80
      %s98 = sphi 0, %s98
      %s100 = sphi 0, %s98
      %s101 = sphi 0, %s100
      %s115 = sphi 0, %s101
      %s119 = sphi 0, %s119
      %s121 = sphi 0, %s119
      %s122 = sphi 0, %s121
      %s136 = sphi 0, %s122
      %s140 = sphi 0, %s140
      %s142 = sphi 0, %s140
      %s143 = sphi 0, %s142
      %s157 = sphi 0, %s143
      %s161 = sphi 0, %s161
      %s163 = sphi 0, %s161
      %s164 = sphi 0, %s163
      %s178 = sphi 0, %s164
      %s184 = sphi 0, %s186
      %s187 = sphi 0, %s184
      %s188 = sphi 0, %s187
      %s204 = sphi 0, %s188
    $region4: #{tpu_custom_call.1} parent=1 // loop_header_branch
      %25 = sbr.rel (%p23) target = $region8
    $region5: #{tpu_custom_call.1} parent=1 // loop_body
      %s27 = ssub.s32 %s22, 1
      %s28 = ssub.s32 %s22, 2
      %s29 = sadd.s32 %s22, 1
      %s30 = ssub.s32 %s22, %s29
      %p31 = scmp.eq.s32.totalorder %s30, 0
      %s33 = sadd.s32 %s32, 1
      %s34 = scalar_select %p31, %s32, %s33
      %p37 = pneg %p31
      %p38 = scmp.eq.s32.totalorder %s22, 1
      %p39 = por %p37, %p38
      %p40 = scmp.ne.s32.totalorder %s32, %s35
      %p41 = scmp.eq.s32.totalorder %s22, 0
      %p42 = por %p40, %p41
      %p43 = scmp.ne.s32.totalorder %s32, %s35
      %p44 = scmp.eq.s32.totalorder %s27, 1
      %p45 = por %p43, %p44
      %p46 = scmp.ne.s32.totalorder %s35, %s36
      %p47 = scmp.eq.s32.totalorder %s27, 0
      %p48 = por %p46, %p47
      %p49 = scmp.ne.s32.totalorder %s35, %s36
      %p50 = scmp.eq.s32.totalorder %s28, 1
      %p51 = por %p49, %p50
      %p53 = scmp.ne.s32.totalorder %s36, %s52
      %p54 = scmp.eq.s32.totalorder %s28, 0
      %p55 = por %p53, %p54
      %s57 = sadd.s32 %s56, 1
      %p60 = scmp.eq.s32.totalorder %s22, 1
      %p61 = scmp.ne.s32.totalorder %s56, %s58
      %p62 = scmp.eq.s32.totalorder %s22, 0
      %p63 = por %p61, %p62
      %p64 = scmp.ne.s32.totalorder %s56, %s58
      %p65 = scmp.eq.s32.totalorder %s27, 1
      %p66 = por %p64, %p65
      %p67 = scmp.ne.s32.totalorder %s58, %s59
      %p68 = scmp.eq.s32.totalorder %s27, 0
      %p69 = por %p67, %p68
      %p70 = scmp.ne.s32.totalorder %s58, %s59
      %p71 = scmp.eq.s32.totalorder %s28, 1
      %p72 = por %p70, %p71
      %p74 = scmp.ne.s32.totalorder %s59, %s73
      %p75 = scmp.eq.s32.totalorder %s28, 0
      %p76 = por %p74, %p75
      %s78 = sadd.s32 %s77, 1
      %p81 = scmp.eq.s32.totalorder %s22, 1
      %p82 = scmp.ne.s32.totalorder %s77, %s79
      %p83 = scmp.eq.s32.totalorder %s22, 0
      %p84 = por %p82, %p83
      %p85 = scmp.ne.s32.totalorder %s77, %s79
      %p86 = scmp.eq.s32.totalorder %s27, 1
      %p87 = por %p85, %p86
      %p88 = scmp.ne.s32.totalorder %s79, %s80
      %p89 = scmp.eq.s32.totalorder %s27, 0
      %p90 = por %p88, %p89
      %p91 = scmp.ne.s32.totalorder %s79, %s80
      %p92 = scmp.eq.s32.totalorder %s28, 1
      %p93 = por %p91, %p92
      %p95 = scmp.ne.s32.totalorder %s80, %s94
      %p96 = scmp.eq.s32.totalorder %s28, 0
      %p97 = por %p95, %p96
      %s99 = sadd.s32 %s98, 1
      %p102 = scmp.eq.s32.totalorder %s22, 1
      %p103 = scmp.ne.s32.totalorder %s98, %s100
      %p104 = scmp.eq.s32.totalorder %s22, 0
      %p105 = por %p103, %p104
      %p106 = scmp.ne.s32.totalorder %s98, %s100
      %p107 = scmp.eq.s32.totalorder %s27, 1
      %p108 = por %p106, %p107
      %p109 = scmp.ne.s32.totalorder %s100, %s101
      %p110 = scmp.eq.s32.totalorder %s27, 0
      %p111 = por %p109, %p110
      %p112 = scmp.ne.s32.totalorder %s100, %s101
      %p113 = scmp.eq.s32.totalorder %s28, 1
      %p114 = por %p112, %p113
      %p116 = scmp.ne.s32.totalorder %s101, %s115
      %p117 = scmp.eq.s32.totalorder %s28, 0
      %p118 = por %p116, %p117
      %s120 = sadd.s32 %s119, 1
      %p123 = scmp.eq.s32.totalorder %s22, 1
      %p124 = scmp.ne.s32.totalorder %s119, %s121
      %p125 = scmp.eq.s32.totalorder %s22, 0
      %p126 = por %p124, %p125
      %p127 = scmp.ne.s32.totalorder %s119, %s121
      %p128 = scmp.eq.s32.totalorder %s27, 1
      %p129 = por %p127, %p128
      %p130 = scmp.ne.s32.totalorder %s121, %s122
      %p131 = scmp.eq.s32.totalorder %s27, 0
      %p132 = por %p130, %p131
      %p133 = scmp.ne.s32.totalorder %s121, %s122
      %p134 = scmp.eq.s32.totalorder %s28, 1
      %p135 = por %p133, %p134
      %p137 = scmp.ne.s32.totalorder %s122, %s136
      %p138 = scmp.eq.s32.totalorder %s28, 0
      %p139 = por %p137, %p138
      %s141 = sadd.s32 %s140, 1
      %p144 = scmp.eq.s32.totalorder %s22, 1
      %p145 = scmp.ne.s32.totalorder %s140, %s142
      %p146 = scmp.eq.s32.totalorder %s22, 0
      %p147 = por %p145, %p146
      %p148 = scmp.ne.s32.totalorder %s140, %s142
      %p149 = scmp.eq.s32.totalorder %s27, 1
      %p150 = por %p148, %p149
      %p151 = scmp.ne.s32.totalorder %s142, %s143
      %p152 = scmp.eq.s32.totalorder %s27, 0
      %p153 = por %p151, %p152
      %p154 = scmp.ne.s32.totalorder %s142, %s143
      %p155 = scmp.eq.s32.totalorder %s28, 1
      %p156 = por %p154, %p155
      %p158 = scmp.ne.s32.totalorder %s143, %s157
      %p159 = scmp.eq.s32.totalorder %s28, 0
      %p160 = por %p158, %p159
      %s162 = sadd.s32 %s161, 1
      %p165 = scmp.eq.s32.totalorder %s22, 1
      %p166 = scmp.ne.s32.totalorder %s161, %s163
      %p167 = scmp.eq.s32.totalorder %s22, 0
      %p168 = por %p166, %p167
      %p169 = scmp.ne.s32.totalorder %s161, %s163
      %p170 = scmp.eq.s32.totalorder %s27, 1
      %p171 = por %p169, %p170
      %p172 = scmp.ne.s32.totalorder %s163, %s164
      %p173 = scmp.eq.s32.totalorder %s27, 0
      %p174 = por %p172, %p173
      %p175 = scmp.ne.s32.totalorder %s163, %s164
      %p176 = scmp.eq.s32.totalorder %s28, 1
      %p177 = por %p175, %p176
      %p179 = scmp.ne.s32.totalorder %s164, %s178
      %p180 = scmp.eq.s32.totalorder %s28, 0
      %p181 = por %p179, %p180
      %s182 = ssub.s32 %s22, %s29
      %p183 = scmp.eq.s32.totalorder %s182, 0
      %s185 = sadd.s32 %s184, 1
      %s186 = scalar_select %p183, %s184, %s185
      %p189 = pneg %p183
      %p190 = scmp.eq.s32.totalorder %s22, 1
      %p191 = por %p189, %p190
      %p192 = scmp.ne.s32.totalorder %s184, %s187
      %p193 = scmp.eq.s32.totalorder %s22, 0
      %p194 = por %p192, %p193
      %p195 = scmp.ne.s32.totalorder %s184, %s187
      %p196 = scmp.eq.s32.totalorder %s27, 1
      %p197 = por %p195, %p196
      %p198 = scmp.ne.s32.totalorder %s187, %s188
      %p199 = scmp.eq.s32.totalorder %s27, 0
      %p200 = por %p198, %p199
      %p201 = scmp.ne.s32.totalorder %s187, %s188
      %p202 = scmp.eq.s32.totalorder %s28, 1
      %p203 = por %p201, %p202
      %p205 = scmp.ne.s32.totalorder %s188, %s204
      %p206 = scmp.eq.s32.totalorder %s28, 0
      %p207 = por %p205, %p206
      %p208 = scmp.le.s32.totalorder 1, %s22
      %p209 = scmp.lt.s32.totalorder %s22, 3
      %p210 = pnand %p208, %p209
      %p211 = pneg %p210
      // Predicated region
      $region9: #{tpu_custom_call.1} parent=5 // pred_check
        _
      $region10: #{tpu_custom_call.1} parent=5 // pred_check_branch
        %213 = sbr.rel (%p210) target = $region12
      $region11: #{tpu_custom_call.1} parent=5 // pred_region
        %s214 = ssub.s32 %s22, 1
        // Predicated region
        $region13: #{tpu_custom_call.1} parent=11 // pred_check
          %p215 = pneg %p69
        $region14: #{tpu_custom_call.1} parent=11 // pred_check_branch
          %217 = sbr.rel (%p215) target = $region16
        $region15: #{tpu_custom_call.1} parent=11 // pred_region
          %219 = vsyncadd [#allocation6], 0
          %s220 = sshll.u32 %s1, 4
          %s221 = int_to_ptr.hbm [resolvable:$true] %s220
          %s222 = sshll.u32 [#allocation5], 4
          %s223 = int_to_ptr.vmem [resolvable:$true] %s222
          %228 = dma.hbm_to_vmem [thread:$0]  %s221, 25088, %s223, [#allocation6], 256, 256, 16
        $region16: #{tpu_custom_call.1} parent=11 // pred_fallthru
          _
        // Predicated region
        $region17: #{tpu_custom_call.1} parent=11 // pred_check
          %p229 = pneg %p90
        $region18: #{tpu_custom_call.1} parent=11 // pred_check_branch
          %231 = sbr.rel (%p229) target = $region20
        $region19: #{tpu_custom_call.1} parent=11 // pred_region
          %233 = vsyncadd [#allocation6], 0
          %s235 = sshll.u32 %s2, 4
          %s236 = int_to_ptr.hbm [resolvable:$true] %s235
          %s237 = sshll.u32 [#allocation7], 4
          %s238 = int_to_ptr.vmem [resolvable:$true] %s237
          %240 = dma.hbm_to_vmem [thread:$0]  %s236, 64, %s238, [#allocation6]
        $region20: #{tpu_custom_call.1} parent=11 // pred_fallthru
          _
        // Predicated region
        $region21: #{tpu_custom_call.1} parent=11 // pred_check
          %p241 = pneg %p111
        $region22: #{tpu_custom_call.1} parent=11 // pred_check_branch
          %243 = sbr.rel (%p241) target = $region24
        $region23: #{tpu_custom_call.1} parent=11 // pred_region
          %245 = vsyncadd [#allocation9], 0
          %s246 = sshll.u32 %s3, 4
          %s247 = int_to_ptr.hbm [resolvable:$true] %s246
          %s248 = sshll.u32 [#allocation8], 4
          %s249 = int_to_ptr.vmem [resolvable:$true] %s248
          %254 = dma.hbm_to_vmem [thread:$0]  %s247, 16384, %s249, [#allocation9], 256, 256, 16
        $region24: #{tpu_custom_call.1} parent=11 // pred_fallthru
          _
        // Predicated region
        $region25: #{tpu_custom_call.1} parent=11 // pred_check
          %p255 = pneg %p132
        $region26: #{tpu_custom_call.1} parent=11 // pred_check_branch
          %257 = sbr.rel (%p255) target = $region28
        $region27: #{tpu_custom_call.1} parent=11 // pred_region
          %259 = vsyncadd [#allocation9], 0
          %s261 = sshll.u32 %s4, 4
          %s262 = int_to_ptr.hbm [resolvable:$true] %s261
          %s263 = sshll.u32 [#allocation10], 4
          %s264 = int_to_ptr.vmem [resolvable:$true] %s263
          %266 = dma.hbm_to_vmem [thread:$0]  %s262, 64, %s264, [#allocation9]
        $region28: #{tpu_custom_call.1} parent=11 // pred_fallthru
          _
        // Predicated region
        $region29: #{tpu_custom_call.1} parent=11 // pred_check
          %p267 = pneg %p153
        $region30: #{tpu_custom_call.1} parent=11 // pred_check_branch
          %269 = sbr.rel (%p267) target = $region32
        $region31: #{tpu_custom_call.1} parent=11 // pred_region
          %271 = vsyncadd [#allocation12], 0
          %s272 = sshll.u32 %s5, 4
          %s273 = int_to_ptr.hbm [resolvable:$true] %s272
          %s274 = sshll.u32 [#allocation11], 4
          %s275 = int_to_ptr.vmem [resolvable:$true] %s274
          %280 = dma.hbm_to_vmem [thread:$0]  %s273, 4096, %s275, [#allocation12], 64, 64, 4
        $region32: #{tpu_custom_call.1} parent=11 // pred_fallthru
          _
        // Predicated region
        $region33: #{tpu_custom_call.1} parent=11 // pred_check
          %p281 = pneg %p174
        $region34: #{tpu_custom_call.1} parent=11 // pred_check_branch
          %283 = sbr.rel (%p281) target = $region36
        $region35: #{tpu_custom_call.1} parent=11 // pred_region
          _
        $region36: #{tpu_custom_call.1} parent=11 // pred_fallthru
          _
      $region12: #{tpu_custom_call.1} parent=5 // pred_fallthru
        _
      %p284 = scmp.lt.s32.totalorder %s22, 2
      // Predicated region
      $region37: #{tpu_custom_call.1} parent=5 // pred_check
        %p285 = pneg %p284
      $region38: #{tpu_custom_call.1} parent=5 // pred_check_branch
        %287 = sbr.rel (%p285) target = $region40
      $region39: #{tpu_custom_call.1} parent=5 // pred_region
        // Predicated region
        $region41: #{tpu_custom_call.1} parent=39 // pred_check
          %p288 = pneg %p42
        $region42: #{tpu_custom_call.1} parent=39 // pred_check_branch
          %290 = sbr.rel (%p288) target = $region44
        $region43: #{tpu_custom_call.1} parent=39 // pred_region
          %s291 = sand.u32 %s32, 1
          %s292 = scalar_lea.sflag [#allocation3], %s291
          %s293 = sand.u32 %s32, 1
          %s294 = smul.addr %s293, 28
          %s295 = scalar_lea.vmem [#allocation2], %s294
          %297 = vsyncadd %s292, 0
          %s298 = smul.addr %s22, 7
          %s299 = smul.addr %s298, 4
          %s300 = scalar_lea.hbm %s0, %s299
          %s302 = sshll.u32 %s300, 4
          %s303 = int_to_ptr.hbm [resolvable:$true] %s302
          %s304 = sshll.u32 %s295, 4
          %s305 = int_to_ptr.vmem [resolvable:$true] %s304
          %307 = dma.hbm_to_vmem [thread:$0]  %s303, 448, %s305, %s292
        $region44: #{tpu_custom_call.1} parent=39 // pred_fallthru
          _
      $region40: #{tpu_custom_call.1} parent=5 // pred_fallthru
        _
      %p308 = scmp.le.s32.totalorder 1, %s22
      %p309 = scmp.lt.s32.totalorder %s22, 3
      %p310 = pnand %p308, %p309
      %p311 = pneg %p310
      // Predicated region
      $region45: #{tpu_custom_call.1} parent=5 // pred_check
        _
      $region46: #{tpu_custom_call.1} parent=5 // pred_check_branch
        %313 = sbr.rel (%p310) target = $region48
      $region47: #{tpu_custom_call.1} parent=5 // pred_region
        %s314 = ssub.s32 %s22, 1
        %s315 = sand.u32 %s35, 1
        %s316 = scalar_lea.sflag [#allocation3], %s315
        %s317 = sand.u32 %s35, 1
        %s318 = smul.addr %s317, 28
        %s319 = scalar_lea.vmem [#allocation2], %s318
        // Predicated region
        $region49: #{tpu_custom_call.1} parent=47 // pred_check
          %p320 = pneg %p48
        $region50: #{tpu_custom_call.1} parent=47 // pred_check_branch
          %322 = sbr.rel (%p320) target = $region52
        $region51: #{tpu_custom_call.1} parent=47 // pred_region
          %324 = dma.done %s316, 448
        $region52: #{tpu_custom_call.1} parent=47 // pred_fallthru
          _
        // Predicated region
        $region53: #{tpu_custom_call.1} parent=47 // pred_check
          %p325 = pneg %p69
        $region54: #{tpu_custom_call.1} parent=47 // pred_check_branch
          %327 = sbr.rel (%p325) target = $region56
        $region55: #{tpu_custom_call.1} parent=47 // pred_region
          %329 = dma.done [#allocation6], 25088
        $region56: #{tpu_custom_call.1} parent=47 // pred_fallthru
          _
        // Predicated region
        $region57: #{tpu_custom_call.1} parent=47 // pred_check
          %p330 = pneg %p90
        $region58: #{tpu_custom_call.1} parent=47 // pred_check_branch
          %332 = sbr.rel (%p330) target = $region60
        $region59: #{tpu_custom_call.1} parent=47 // pred_region
          %334 = dma.done [#allocation6], 64
        $region60: #{tpu_custom_call.1} parent=47 // pred_fallthru
          _
        // Predicated region
        $region61: #{tpu_custom_call.1} parent=47 // pred_check
          %p335 = pneg %p111
        $region62: #{tpu_custom_call.1} parent=47 // pred_check_branch
          %337 = sbr.rel (%p335) target = $region64
        $region63: #{tpu_custom_call.1} parent=47 // pred_region
          %339 = dma.done [#allocation9], 16384
        $region64: #{tpu_custom_call.1} parent=47 // pred_fallthru
          _
        // Predicated region
        $region65: #{tpu_custom_call.1} parent=47 // pred_check
          %p340 = pneg %p132
        $region66: #{tpu_custom_call.1} parent=47 // pred_check_branch
          %342 = sbr.rel (%p340) target = $region68
        $region67: #{tpu_custom_call.1} parent=47 // pred_region
          %344 = dma.done [#allocation9], 64
        $region68: #{tpu_custom_call.1} parent=47 // pred_fallthru
          _
        // Predicated region
        $region69: #{tpu_custom_call.1} parent=47 // pred_check
          %p345 = pneg %p153
        $region70: #{tpu_custom_call.1} parent=47 // pred_check_branch
          %347 = sbr.rel (%p345) target = $region72
        $region71: #{tpu_custom_call.1} parent=47 // pred_region
          %349 = dma.done [#allocation12], 4096
        $region72: #{tpu_custom_call.1} parent=47 // pred_fallthru
          _
        %s350 = sand.u32 %s35, 1
        %s351 = scalar_lea.sflag [#allocation3], %s350
        %s352 = sand.u32 %s35, 1
        %s353 = smul.addr %s352, 28
        %s354 = scalar_lea.vmem [#allocation2], %s353
        %p355 = pneg %p48
        %p356 = pneg %p45
        %p357 = pneg %p69
        %p358 = pneg %p66
        %p359 = pneg %p90
        %p360 = pneg %p87
        %p361 = pneg %p111
        %p362 = pneg %p108
        %p363 = pneg %p132
        %p364 = pneg %p129
        %p365 = pneg %p153
        %p366 = pneg %p150
        %p367 = pneg %p174
        %p368 = pneg %p171
        %p369 = pneg %p200
        %p370 = pneg %p197
        %s371 = sand.u32 %s187, 1
        %s372 = scalar_lea.sflag [#allocation4], %s371
        %s373 = sand.u32 %s187, 1
        %s374 = smul.addr %s373, 8
        %s375 = scalar_lea.vmem [#allocation13], %s374
        %v377 = vld [vmem:[%s319] sm:$0xff]
        %v378 = vld [vmem:[%s319 + $0x8] sm:$0xff]
        %v379 = vld [vmem:[%s319 + $0x10] sm:$0xff]
        %v380 = vld [vmem:[%s319 + $0x18] sm:$0xf]
        %v381 = vld [vmem:[#allocation5] sm:$0xff]
        %v382 = vld [vmem:[#allocation5 + $0x8] sm:$0xff]
        %v383 = vld [vmem:[#allocation5 + $0x10] sm:$0xff]
        %v384 = vld [vmem:[#allocation5 + $0x18] sm:$0xff]
        %v385 = vld [vmem:[#allocation5 + $0x20] sm:$0xff]
        %v386 = vld [vmem:[#allocation5 + $0x28] sm:$0xff]
        %v387 = vld [vmem:[#allocation5 + $0x30] sm:$0xff]
        %v388 = vld [vmem:[#allocation5 + $0x38] sm:$0xff]
        %v389 = vld [vmem:[#allocation5 + $0x40] sm:$0xff]
        %v390 = vld [vmem:[#allocation5 + $0x48] sm:$0xff]
        %v391 = vld [vmem:[#allocation5 + $0x50] sm:$0xff]
        %v392 = vld [vmem:[#allocation5 + $0x58] sm:$0xff]
        %v393 = vld [vmem:[#allocation5 + $0x60] sm:$0xff]
        %v394 = vld [vmem:[#allocation5 + $0x68] sm:$0xff]
        %v395 = vld [vmem:[#allocation5 + $0x70] sm:$0xff]
        %v396 = vld [vmem:[#allocation5 + $0x78] sm:$0xff]
        %v397 = vld [vmem:[#allocation5 + $0x80] sm:$0xff]
        %v398 = vld [vmem:[#allocation5 + $0x88] sm:$0xff]
        %v399 = vld [vmem:[#allocation5 + $0x90] sm:$0xff]
        %v400 = vld [vmem:[#allocation5 + $0x98] sm:$0xff]
        %v401 = vld [vmem:[#allocation5 + $0xa0] sm:$0xff]
        %v402 = vld [vmem:[#allocation5 + $0xa8] sm:$0xff]
        %v403 = vld [vmem:[#allocation5 + $0xb0] sm:$0xff]
        %v404 = vld [vmem:[#allocation5 + $0xb8] sm:$0xff]
        %v405 = vld [vmem:[#allocation5 + $0xc0] sm:$0xff]
        %v406 = vld [vmem:[#allocation5 + $0xc8] sm:$0xff]
        %v407 = vld [vmem:[#allocation5 + $0xd0] sm:$0xff]
        %v408 = vld [vmem:[#allocation5 + $0xd8] sm:$0xff]
        %v409 = vld [vmem:[#allocation5 + $0xe0] sm:$0xff]
        %v410 = vld [vmem:[#allocation5 + $0xe8] sm:$0xff]
        %v411 = vld [vmem:[#allocation5 + $0xf0] sm:$0xff]
        %v412 = vld [vmem:[#allocation5 + $0xf8] sm:$0xff]
        %v413 = vld [vmem:[#allocation5 + $0x100] sm:$0xff]
        %v414 = vld [vmem:[#allocation5 + $0x108] sm:$0xff]
        %v415 = vld [vmem:[#allocation5 + $0x110] sm:$0xff]
        %v416 = vld [vmem:[#allocation5 + $0x118] sm:$0xff]
        %v417 = vld [vmem:[#allocation5 + $0x120] sm:$0xff]
        %v418 = vld [vmem:[#allocation5 + $0x128] sm:$0xff]
        %v419 = vld [vmem:[#allocation5 + $0x130] sm:$0xff]
        %v420 = vld [vmem:[#allocation5 + $0x138] sm:$0xff]
        %v421 = vld [vmem:[#allocation5 + $0x140] sm:$0xff]
        %v422 = vld [vmem:[#allocation5 + $0x148] sm:$0xff]
        %v423 = vld [vmem:[#allocation5 + $0x150] sm:$0xff]
        %v424 = vld [vmem:[#allocation5 + $0x158] sm:$0xff]
        %v425 = vld [vmem:[#allocation5 + $0x160] sm:$0xff]
        %v426 = vld [vmem:[#allocation5 + $0x168] sm:$0xff]
        %v427 = vld [vmem:[#allocation5 + $0x170] sm:$0xff]
        %v428 = vld [vmem:[#allocation5 + $0x178] sm:$0xff]
        %v429 = vld [vmem:[#allocation5 + $0x180] sm:$0xff]
        %v430 = vld [vmem:[#allocation5 + $0x188] sm:$0xff]
        %v431 = vld [vmem:[#allocation5 + $0x190] sm:$0xff]
        %v432 = vld [vmem:[#allocation5 + $0x198] sm:$0xff]
        %v433 = vld [vmem:[#allocation5 + $0x1a0] sm:$0xff]
        %v434 = vld [vmem:[#allocation5 + $0x1a8] sm:$0xff]
        %v435 = vld [vmem:[#allocation5 + $0x1b0] sm:$0xff]
        %v436 = vld [vmem:[#allocation5 + $0x1b8] sm:$0xff]
        %v437 = vld [vmem:[#allocation5 + $0x1c0] sm:$0xff]
        %v438 = vld [vmem:[#allocation5 + $0x1c8] sm:$0xff]
        %v439 = vld [vmem:[#allocation5 + $0x1d0] sm:$0xff]
        %v440 = vld [vmem:[#allocation5 + $0x1d8] sm:$0xff]
        %v441 = vld [vmem:[#allocation5 + $0x1e0] sm:$0xff]
        %v442 = vld [vmem:[#allocation5 + $0x1e8] sm:$0xff]
        %v443 = vld [vmem:[#allocation5 + $0x1f0] sm:$0xff]
        %v444 = vld [vmem:[#allocation5 + $0x1f8] sm:$0xff]
        %v445 = vld [vmem:[#allocation5 + $0x200] sm:$0xff]
        %v446 = vld [vmem:[#allocation5 + $0x208] sm:$0xff]
        %v447 = vld [vmem:[#allocation5 + $0x210] sm:$0xff]
        %v448 = vld [vmem:[#allocation5 + $0x218] sm:$0xff]
        %v449 = vld [vmem:[#allocation5 + $0x220] sm:$0xff]
        %v450 = vld [vmem:[#allocation5 + $0x228] sm:$0xff]
        %v451 = vld [vmem:[#allocation5 + $0x230] sm:$0xff]
        %v452 = vld [vmem:[#allocation5 + $0x238] sm:$0xff]
        %v453 = vld [vmem:[#allocation5 + $0x240] sm:$0xff]
        %v454 = vld [vmem:[#allocation5 + $0x248] sm:$0xff]
        %v455 = vld [vmem:[#allocation5 + $0x250] sm:$0xff]
        %v456 = vld [vmem:[#allocation5 + $0x258] sm:$0xff]
        %v457 = vld [vmem:[#allocation5 + $0x260] sm:$0xff]
        %v458 = vld [vmem:[#allocation5 + $0x268] sm:$0xff]
        %v459 = vld [vmem:[#allocation5 + $0x270] sm:$0xff]
        %v460 = vld [vmem:[#allocation5 + $0x278] sm:$0xff]
        %v461 = vld [vmem:[#allocation5 + $0x280] sm:$0xff]
        %v462 = vld [vmem:[#allocation5 + $0x288] sm:$0xff]
        %v463 = vld [vmem:[#allocation5 + $0x290] sm:$0xff]
        %v464 = vld [vmem:[#allocation5 + $0x298] sm:$0xff]
        %v465 = vld [vmem:[#allocation5 + $0x2a0] sm:$0xff]
        %v466 = vld [vmem:[#allocation5 + $0x2a8] sm:$0xff]
        %v467 = vld [vmem:[#allocation5 + $0x2b0] sm:$0xff]
        %v468 = vld [vmem:[#allocation5 + $0x2b8] sm:$0xff]
        %v469 = vld [vmem:[#allocation5 + $0x2c0] sm:$0xff]
        %v470 = vld [vmem:[#allocation5 + $0x2c8] sm:$0xff]
        %v471 = vld [vmem:[#allocation5 + $0x2d0] sm:$0xff]
        %v472 = vld [vmem:[#allocation5 + $0x2d8] sm:$0xff]
        %v473 = vld [vmem:[#allocation5 + $0x2e0] sm:$0xff]
        %v474 = vld [vmem:[#allocation5 + $0x2e8] sm:$0xff]
        %v475 = vld [vmem:[#allocation5 + $0x2f0] sm:$0xff]
        %v476 = vld [vmem:[#allocation5 + $0x2f8] sm:$0xff]
        %v477 = vld [vmem:[#allocation5 + $0x300] sm:$0xff]
        %v478 = vld [vmem:[#allocation5 + $0x308] sm:$0xff]
        %v479 = vld [vmem:[#allocation5 + $0x310] sm:$0xff]
        %v480 = vld [vmem:[#allocation5 + $0x318] sm:$0xff]
        %v481 = vld [vmem:[#allocation5 + $0x320] sm:$0xff]
        %v482 = vld [vmem:[#allocation5 + $0x328] sm:$0xff]
        %v483 = vld [vmem:[#allocation5 + $0x330] sm:$0xff]
        %v484 = vld [vmem:[#allocation5 + $0x338] sm:$0xff]
        %v485 = vld [vmem:[#allocation5 + $0x340] sm:$0xff]
        %v486 = vld [vmem:[#allocation5 + $0x348] sm:$0xff]
        %v487 = vld [vmem:[#allocation5 + $0x350] sm:$0xff]
        %v488 = vld [vmem:[#allocation5 + $0x358] sm:$0xff]
        %v489 = vld [vmem:[#allocation5 + $0x360] sm:$0xff]
        %v490 = vld [vmem:[#allocation5 + $0x368] sm:$0xff]
        %v491 = vld [vmem:[#allocation5 + $0x370] sm:$0xff]
        %v492 = vld [vmem:[#allocation5 + $0x378] sm:$0xff]
        %v493 = vld [vmem:[#allocation5 + $0x380] sm:$0xff]
        %v494 = vld [vmem:[#allocation5 + $0x388] sm:$0xff]
        %v495 = vld [vmem:[#allocation5 + $0x390] sm:$0xff]
        %v496 = vld [vmem:[#allocation5 + $0x398] sm:$0xff]
        %v497 = vld [vmem:[#allocation5 + $0x3a0] sm:$0xff]
        %v498 = vld [vmem:[#allocation5 + $0x3a8] sm:$0xff]
        %v499 = vld [vmem:[#allocation5 + $0x3b0] sm:$0xff]
        %v500 = vld [vmem:[#allocation5 + $0x3b8] sm:$0xff]
        %v501 = vld [vmem:[#allocation5 + $0x3c0] sm:$0xff]
        %v502 = vld [vmem:[#allocation5 + $0x3c8] sm:$0xff]
        %v503 = vld [vmem:[#allocation5 + $0x3d0] sm:$0xff]
        %v504 = vld [vmem:[#allocation5 + $0x3d8] sm:$0xff]
        %v505 = vld [vmem:[#allocation5 + $0x3e0] sm:$0xff]
        %v506 = vld [vmem:[#allocation5 + $0x3e8] sm:$0xff]
        %v507 = vld [vmem:[#allocation5 + $0x3f0] sm:$0xff]
        %v508 = vld [vmem:[#allocation5 + $0x3f8] sm:$0xff]
        %v509 = vld [vmem:[#allocation5 + $0x400] sm:$0xff]
        %v510 = vld [vmem:[#allocation5 + $0x408] sm:$0xff]
        %v511 = vld [vmem:[#allocation5 + $0x410] sm:$0xff]
        %v512 = vld [vmem:[#allocation5 + $0x418] sm:$0xff]
        %v513 = vld [vmem:[#allocation5 + $0x420] sm:$0xff]
        %v514 = vld [vmem:[#allocation5 + $0x428] sm:$0xff]
        %v515 = vld [vmem:[#allocation5 + $0x430] sm:$0xff]
        %v516 = vld [vmem:[#allocation5 + $0x438] sm:$0xff]
        %v517 = vld [vmem:[#allocation5 + $0x440] sm:$0xff]
        %v518 = vld [vmem:[#allocation5 + $0x448] sm:$0xff]
        %v519 = vld [vmem:[#allocation5 + $0x450] sm:$0xff]
        %v520 = vld [vmem:[#allocation5 + $0x458] sm:$0xff]
        %v521 = vld [vmem:[#allocation5 + $0x460] sm:$0xff]
        %v522 = vld [vmem:[#allocation5 + $0x468] sm:$0xff]
        %v523 = vld [vmem:[#allocation5 + $0x470] sm:$0xff]
        %v524 = vld [vmem:[#allocation5 + $0x478] sm:$0xff]
        %v525 = vld [vmem:[#allocation5 + $0x480] sm:$0xff]
        %v526 = vld [vmem:[#allocation5 + $0x488] sm:$0xff]
        %v527 = vld [vmem:[#allocation5 + $0x490] sm:$0xff]
        %v528 = vld [vmem:[#allocation5 + $0x498] sm:$0xff]
        %v529 = vld [vmem:[#allocation5 + $0x4a0] sm:$0xff]
        %v530 = vld [vmem:[#allocation5 + $0x4a8] sm:$0xff]
        %v531 = vld [vmem:[#allocation5 + $0x4b0] sm:$0xff]
        %v532 = vld [vmem:[#allocation5 + $0x4b8] sm:$0xff]
        %v533 = vld [vmem:[#allocation5 + $0x4c0] sm:$0xff]
        %v534 = vld [vmem:[#allocation5 + $0x4c8] sm:$0xff]
        %v535 = vld [vmem:[#allocation5 + $0x4d0] sm:$0xff]
        %v536 = vld [vmem:[#allocation5 + $0x4d8] sm:$0xff]
        %v537 = vld [vmem:[#allocation5 + $0x4e0] sm:$0xff]
        %v538 = vld [vmem:[#allocation5 + $0x4e8] sm:$0xff]
        %v539 = vld [vmem:[#allocation5 + $0x4f0] sm:$0xff]
        %v540 = vld [vmem:[#allocation5 + $0x4f8] sm:$0xff]
        %v541 = vld [vmem:[#allocation5 + $0x500] sm:$0xff]
        %v542 = vld [vmem:[#allocation5 + $0x508] sm:$0xff]
        %v543 = vld [vmem:[#allocation5 + $0x510] sm:$0xff]
        %v544 = vld [vmem:[#allocation5 + $0x518] sm:$0xff]
        %v545 = vld [vmem:[#allocation5 + $0x520] sm:$0xff]
        %v546 = vld [vmem:[#allocation5 + $0x528] sm:$0xff]
        %v547 = vld [vmem:[#allocation5 + $0x530] sm:$0xff]
        %v548 = vld [vmem:[#allocation5 + $0x538] sm:$0xff]
        %v549 = vld [vmem:[#allocation5 + $0x540] sm:$0xff]
        %v550 = vld [vmem:[#allocation5 + $0x548] sm:$0xff]
        %v551 = vld [vmem:[#allocation5 + $0x550] sm:$0xff]
        %v552 = vld [vmem:[#allocation5 + $0x558] sm:$0xff]
        %v553 = vld [vmem:[#allocation5 + $0x560] sm:$0xff]
        %v554 = vld [vmem:[#allocation5 + $0x568] sm:$0xff]
        %v555 = vld [vmem:[#allocation5 + $0x570] sm:$0xff]
        %v556 = vld [vmem:[#allocation5 + $0x578] sm:$0xff]
        %v557 = vld [vmem:[#allocation5 + $0x580] sm:$0xff]
        %v558 = vld [vmem:[#allocation5 + $0x588] sm:$0xff]
        %v559 = vld [vmem:[#allocation5 + $0x590] sm:$0xff]
        %v560 = vld [vmem:[#allocation5 + $0x598] sm:$0xff]
        %v561 = vld [vmem:[#allocation5 + $0x5a0] sm:$0xff]
        %v562 = vld [vmem:[#allocation5 + $0x5a8] sm:$0xff]
        %v563 = vld [vmem:[#allocation5 + $0x5b0] sm:$0xff]
        %v564 = vld [vmem:[#allocation5 + $0x5b8] sm:$0xff]
        %v565 = vld [vmem:[#allocation5 + $0x5c0] sm:$0xff]
        %v566 = vld [vmem:[#allocation5 + $0x5c8] sm:$0xff]
        %v567 = vld [vmem:[#allocation5 + $0x5d0] sm:$0xff]
        %v568 = vld [vmem:[#allocation5 + $0x5d8] sm:$0xff]
        %v569 = vld [vmem:[#allocation5 + $0x5e0] sm:$0xff]
        %v570 = vld [vmem:[#allocation5 + $0x5e8] sm:$0xff]
        %v571 = vld [vmem:[#allocation5 + $0x5f0] sm:$0xff]
        %v572 = vld [vmem:[#allocation5 + $0x5f8] sm:$0xff]
        %v573 = vld [vmem:[#allocation5 + $0x600] sm:$0xff]
        %v574 = vld [vmem:[#allocation5 + $0x608] sm:$0xff]
        %v575 = vld [vmem:[#allocation5 + $0x610] sm:$0xff]
        %v576 = vld [vmem:[#allocation5 + $0x618] sm:$0xff]
        %v581 = vunpack.c.l.b16 %v377
        %v582 = vunpack.c.h.b16 %v377
        %v583 = vunpack.c.l.b16 %v378
        %v584 = vunpack.c.h.b16 %v378
        %v585 = vunpack.c.l.b16 %v379
        %v586 = vunpack.c.h.b16 %v379
        %v587 = vunpack.c.l.b16 %v380
        %v588 = vpack.c.b16 %v581, %v581
        %v589 = vpack.c.b16 %v582, %v582
        %v590 = vpack.c.b16 %v583, %v583
        %v591 = vpack.c.b16 %v584, %v584
        %v592 = vpack.c.b16 %v585, %v585
        %v593 = vpack.c.b16 %v586, %v586
        %v594 = vpack.c.b16 %v587, %v587
        %v797 = vunpack.c.l.b16 %v381
        %v798 = vunpack.c.h.b16 %v381
        %v799 = vunpack.c.l.b16 %v382
        %v800 = vunpack.c.h.b16 %v382
        %v801 = vunpack.c.l.b16 %v383
        %v802 = vunpack.c.h.b16 %v383
        %v803 = vunpack.c.l.b16 %v384
        %v804 = vunpack.c.h.b16 %v384
        %v805 = vunpack.c.l.b16 %v385
        %v806 = vunpack.c.h.b16 %v385
        %v807 = vunpack.c.l.b16 %v386
        %v808 = vunpack.c.h.b16 %v386
        %v809 = vunpack.c.l.b16 %v387
        %v810 = vunpack.c.h.b16 %v387
        %v811 = vunpack.c.l.b16 %v388
        %v812 = vunpack.c.h.b16 %v388
        %v813 = vunpack.c.l.b16 %v389
        %v814 = vunpack.c.h.b16 %v389
        %v815 = vunpack.c.l.b16 %v390
        %v816 = vunpack.c.h.b16 %v390
        %v817 = vunpack.c.l.b16 %v391
        %v818 = vunpack.c.h.b16 %v391
        %v819 = vunpack.c.l.b16 %v392
        %v820 = vunpack.c.h.b16 %v392
        %v821 = vunpack.c.l.b16 %v393
        %v822 = vunpack.c.h.b16 %v393
        %v823 = vunpack.c.l.b16 %v394
        %v824 = vunpack.c.h.b16 %v394
        %v825 = vunpack.c.l.b16 %v395
        %v826 = vunpack.c.h.b16 %v395
        %v827 = vunpack.c.l.b16 %v396
        %v828 = vunpack.c.h.b16 %v396
        %v829 = vunpack.c.l.b16 %v397
        %v830 = vunpack.c.h.b16 %v397
        %v831 = vunpack.c.l.b16 %v398
        %v832 = vunpack.c.h.b16 %v398
        %v833 = vunpack.c.l.b16 %v399
        %v834 = vunpack.c.h.b16 %v399
        %v835 = vunpack.c.l.b16 %v400
        %v836 = vunpack.c.h.b16 %v400
        %v837 = vunpack.c.l.b16 %v401
        %v838 = vunpack.c.h.b16 %v401
        %v839 = vunpack.c.l.b16 %v402
        %v840 = vunpack.c.h.b16 %v402
        %v841 = vunpack.c.l.b16 %v403
        %v842 = vunpack.c.h.b16 %v403
        %v843 = vunpack.c.l.b16 %v404
        %v844 = vunpack.c.h.b16 %v404
        %v845 = vunpack.c.l.b16 %v405
        %v846 = vunpack.c.h.b16 %v405
        %v847 = vunpack.c.l.b16 %v406
        %v848 = vunpack.c.h.b16 %v406
        %v849 = vunpack.c.l.b16 %v407
        %v850 = vunpack.c.h.b16 %v407
        %v851 = vunpack.c.l.b16 %v408
        %v852 = vunpack.c.h.b16 %v408
        %v853 = vunpack.c.l.b16 %v409
        %v854 = vunpack.c.h.b16 %v409
        %v855 = vunpack.c.l.b16 %v410
        %v856 = vunpack.c.h.b16 %v410
        %v857 = vunpack.c.l.b16 %v411
        %v858 = vunpack.c.h.b16 %v411
        %v859 = vunpack.c.l.b16 %v412
        %v860 = vunpack.c.h.b16 %v412
        %v861 = vunpack.c.l.b16 %v413
        %v862 = vunpack.c.h.b16 %v413
        %v863 = vunpack.c.l.b16 %v414
        %v864 = vunpack.c.h.b16 %v414
        %v865 = vunpack.c.l.b16 %v415
        %v866 = vunpack.c.h.b16 %v415
        %v867 = vunpack.c.l.b16 %v416
        %v868 = vunpack.c.h.b16 %v416
        %v869 = vunpack.c.l.b16 %v417
        %v870 = vunpack.c.h.b16 %v417
        %v871 = vunpack.c.l.b16 %v418
        %v872 = vunpack.c.h.b16 %v418
        %v873 = vunpack.c.l.b16 %v419
        %v874 = vunpack.c.h.b16 %v419
        %v875 = vunpack.c.l.b16 %v420
        %v876 = vunpack.c.h.b16 %v420
        %v877 = vunpack.c.l.b16 %v421
        %v878 = vunpack.c.h.b16 %v421
        %v879 = vunpack.c.l.b16 %v422
        %v880 = vunpack.c.h.b16 %v422
        %v881 = vunpack.c.l.b16 %v423
        %v882 = vunpack.c.h.b16 %v423
        %v883 = vunpack.c.l.b16 %v424
        %v884 = vunpack.c.h.b16 %v424
        %v885 = vunpack.c.l.b16 %v425
        %v886 = vunpack.c.h.b16 %v425
        %v887 = vunpack.c.l.b16 %v426
        %v888 = vunpack.c.h.b16 %v426
        %v889 = vunpack.c.l.b16 %v427
        %v890 = vunpack.c.h.b16 %v427
        %v891 = vunpack.c.l.b16 %v428
        %v892 = vunpack.c.h.b16 %v428
        %v893 = vunpack.c.l.b16 %v429
        %v894 = vunpack.c.h.b16 %v429
        %v895 = vunpack.c.l.b16 %v430
        %v896 = vunpack.c.h.b16 %v430
        %v897 = vunpack.c.l.b16 %v431
        %v898 = vunpack.c.h.b16 %v431
        %v899 = vunpack.c.l.b16 %v432
        %v900 = vunpack.c.h.b16 %v432
        %v901 = vunpack.c.l.b16 %v433
        %v902 = vunpack.c.h.b16 %v433
        %v903 = vunpack.c.l.b16 %v434
        %v904 = vunpack.c.h.b16 %v434
        %v905 = vunpack.c.l.b16 %v435
        %v906 = vunpack.c.h.b16 %v435
        %v907 = vunpack.c.l.b16 %v436
        %v908 = vunpack.c.h.b16 %v436
        %v909 = vunpack.c.l.b16 %v437
        %v910 = vunpack.c.h.b16 %v437
        %v911 = vunpack.c.l.b16 %v438
        %v912 = vunpack.c.h.b16 %v438
        %v913 = vunpack.c.l.b16 %v439
        %v914 = vunpack.c.h.b16 %v439
        %v915 = vunpack.c.l.b16 %v440
        %v916 = vunpack.c.h.b16 %v440
        %v917 = vunpack.c.l.b16 %v441
        %v918 = vunpack.c.h.b16 %v441
        %v919 = vunpack.c.l.b16 %v442
        %v920 = vunpack.c.h.b16 %v442
        %v921 = vunpack.c.l.b16 %v443
        %v922 = vunpack.c.h.b16 %v443
        %v923 = vunpack.c.l.b16 %v444
        %v924 = vunpack.c.h.b16 %v444
        %v925 = vunpack.c.l.b16 %v445
        %v926 = vunpack.c.h.b16 %v445
        %v927 = vunpack.c.l.b16 %v446
        %v928 = vunpack.c.h.b16 %v446
        %v929 = vunpack.c.l.b16 %v447
        %v930 = vunpack.c.h.b16 %v447
        %v931 = vunpack.c.l.b16 %v448
        %v932 = vunpack.c.h.b16 %v448
        %v933 = vunpack.c.l.b16 %v449
        %v934 = vunpack.c.h.b16 %v449
        %v935 = vunpack.c.l.b16 %v450
        %v936 = vunpack.c.h.b16 %v450
        %v937 = vunpack.c.l.b16 %v451
        %v938 = vunpack.c.h.b16 %v451
        %v939 = vunpack.c.l.b16 %v452
        %v940 = vunpack.c.h.b16 %v452
        %v941 = vunpack.c.l.b16 %v453
        %v942 = vunpack.c.h.b16 %v453
        %v943 = vunpack.c.l.b16 %v454
        %v944 = vunpack.c.h.b16 %v454
        %v945 = vunpack.c.l.b16 %v455
        %v946 = vunpack.c.h.b16 %v455
        %v947 = vunpack.c.l.b16 %v456
        %v948 = vunpack.c.h.b16 %v456
        %v949 = vunpack.c.l.b16 %v457
        %v950 = vunpack.c.h.b16 %v457
        %v951 = vunpack.c.l.b16 %v458
        %v952 = vunpack.c.h.b16 %v458
        %v953 = vunpack.c.l.b16 %v459
        %v954 = vunpack.c.h.b16 %v459
        %v955 = vunpack.c.l.b16 %v460
        %v956 = vunpack.c.h.b16 %v460
        %v957 = vunpack.c.l.b16 %v461
        %v958 = vunpack.c.h.b16 %v461
        %v959 = vunpack.c.l.b16 %v462
        %v960 = vunpack.c.h.b16 %v462
        %v961 = vunpack.c.l.b16 %v463
        %v962 = vunpack.c.h.b16 %v463
        %v963 = vunpack.c.l.b16 %v464
        %v964 = vunpack.c.h.b16 %v464
        %v965 = vunpack.c.l.b16 %v465
        %v966 = vunpack.c.h.b16 %v465
        %v967 = vunpack.c.l.b16 %v466
        %v968 = vunpack.c.h.b16 %v466
        %v969 = vunpack.c.l.b16 %v467
        %v970 = vunpack.c.h.b16 %v467
        %v971 = vunpack.c.l.b16 %v468
        %v972 = vunpack.c.h.b16 %v468
        %v973 = vunpack.c.l.b16 %v469
        %v974 = vunpack.c.h.b16 %v469
        %v975 = vunpack.c.l.b16 %v470
        %v976 = vunpack.c.h.b16 %v470
        %v977 = vunpack.c.l.b16 %v471
        %v978 = vunpack.c.h.b16 %v471
        %v979 = vunpack.c.l.b16 %v472
        %v980 = vunpack.c.h.b16 %v472
        %v981 = vunpack.c.l.b16 %v473
        %v982 = vunpack.c.h.b16 %v473
        %v983 = vunpack.c.l.b16 %v474
        %v984 = vunpack.c.h.b16 %v474
        %v985 = vunpack.c.l.b16 %v475
        %v986 = vunpack.c.h.b16 %v475
        %v987 = vunpack.c.l.b16 %v476
        %v988 = vunpack.c.h.b16 %v476
        %v989 = vunpack.c.l.b16 %v477
        %v990 = vunpack.c.h.b16 %v477
        %v991 = vunpack.c.l.b16 %v478
        %v992 = vunpack.c.h.b16 %v478
        %v993 = vunpack.c.l.b16 %v479
        %v994 = vunpack.c.h.b16 %v479
        %v995 = vunpack.c.l.b16 %v480
        %v996 = vunpack.c.h.b16 %v480
        %v997 = vunpack.c.l.b16 %v481
        %v998 = vunpack.c.h.b16 %v481
        %v999 = vunpack.c.l.b16 %v482
        %v1000 = vunpack.c.h.b16 %v482
        %v1001 = vunpack.c.l.b16 %v483
        %v1002 = vunpack.c.h.b16 %v483
        %v1003 = vunpack.c.l.b16 %v484
        %v1004 = vunpack.c.h.b16 %v484
        %v1005 = vunpack.c.l.b16 %v485
        %v1006 = vunpack.c.h.b16 %v485
        %v1007 = vunpack.c.l.b16 %v486
        %v1008 = vunpack.c.h.b16 %v486
        %v1009 = vunpack.c.l.b16 %v487
        %v1010 = vunpack.c.h.b16 %v487
        %v1011 = vunpack.c.l.b16 %v488
        %v1012 = vunpack.c.h.b16 %v488
        %v1013 = vunpack.c.l.b16 %v489
        %v1014 = vunpack.c.h.b16 %v489
        %v1015 = vunpack.c.l.b16 %v490
        %v1016 = vunpack.c.h.b16 %v490
        %v1017 = vunpack.c.l.b16 %v491
        %v1018 = vunpack.c.h.b16 %v491
        %v1019 = vunpack.c.l.b16 %v492
        %v1020 = vunpack.c.h.b16 %v492
        %v1021 = vunpack.c.l.b16 %v493
        %v1022 = vunpack.c.h.b16 %v493
        %v1023 = vunpack.c.l.b16 %v494
        %v1024 = vunpack.c.h.b16 %v494
        %v1025 = vunpack.c.l.b16 %v495
        %v1026 = vunpack.c.h.b16 %v495
        %v1027 = vunpack.c.l.b16 %v496
        %v1028 = vunpack.c.h.b16 %v496
        %v1029 = vunpack.c.l.b16 %v497
        %v1030 = vunpack.c.h.b16 %v497
        %v1031 = vunpack.c.l.b16 %v498
        %v1032 = vunpack.c.h.b16 %v498
        %v1033 = vunpack.c.l.b16 %v499
        %v1034 = vunpack.c.h.b16 %v499
        %v1035 = vunpack.c.l.b16 %v500
        %v1036 = vunpack.c.h.b16 %v500
        %v1037 = vunpack.c.l.b16 %v501
        %v1038 = vunpack.c.h.b16 %v501
        %v1039 = vunpack.c.l.b16 %v502
        %v1040 = vunpack.c.h.b16 %v502
        %v1041 = vunpack.c.l.b16 %v503
        %v1042 = vunpack.c.h.b16 %v503
        %v1043 = vunpack.c.l.b16 %v504
        %v1044 = vunpack.c.h.b16 %v504
        %v1045 = vunpack.c.l.b16 %v505
        %v1046 = vunpack.c.h.b16 %v505
        %v1047 = vunpack.c.l.b16 %v506
        %v1048 = vunpack.c.h.b16 %v506
        %v1049 = vunpack.c.l.b16 %v507
        %v1050 = vunpack.c.h.b16 %v507
        %v1051 = vunpack.c.l.b16 %v508
        %v1052 = vunpack.c.h.b16 %v508
        %v1053 = vunpack.c.l.b16 %v509
        %v1054 = vunpack.c.h.b16 %v509
        %v1055 = vunpack.c.l.b16 %v510
        %v1056 = vunpack.c.h.b16 %v510
        %v1057 = vunpack.c.l.b16 %v511
        %v1058 = vunpack.c.h.b16 %v511
        %v1059 = vunpack.c.l.b16 %v512
        %v1060 = vunpack.c.h.b16 %v512
        %v1061 = vunpack.c.l.b16 %v513
        %v1062 = vunpack.c.h.b16 %v513
        %v1063 = vunpack.c.l.b16 %v514
        %v1064 = vunpack.c.h.b16 %v514
        %v1065 = vunpack.c.l.b16 %v515
        %v1066 = vunpack.c.h.b16 %v515
        %v1067 = vunpack.c.l.b16 %v516
        %v1068 = vunpack.c.h.b16 %v516
        %v1069 = vunpack.c.l.b16 %v517
        %v1070 = vunpack.c.h.b16 %v517
        %v1071 = vunpack.c.l.b16 %v518
        %v1072 = vunpack.c.h.b16 %v518
        %v1073 = vunpack.c.l.b16 %v519
        %v1074 = vunpack.c.h.b16 %v519
        %v1075 = vunpack.c.l.b16 %v520
        %v1076 = vunpack.c.h.b16 %v520
        %v1077 = vunpack.c.l.b16 %v521
        %v1078 = vunpack.c.h.b16 %v521
        %v1079 = vunpack.c.l.b16 %v522
        %v1080 = vunpack.c.h.b16 %v522
        %v1081 = vunpack.c.l.b16 %v523
        %v1082 = vunpack.c.h.b16 %v523
        %v1083 = vunpack.c.l.b16 %v524
        %v1084 = vunpack.c.h.b16 %v524
        %v1085 = vunpack.c.l.b16 %v525
        %v1086 = vunpack.c.h.b16 %v525
        %v1087 = vunpack.c.l.b16 %v526
        %v1088 = vunpack.c.h.b16 %v526
        %v1089 = vunpack.c.l.b16 %v527
        %v1090 = vunpack.c.h.b16 %v527
        %v1091 = vunpack.c.l.b16 %v528
        %v1092 = vunpack.c.h.b16 %v528
        %v1093 = vunpack.c.l.b16 %v529
        %v1094 = vunpack.c.h.b16 %v529
        %v1095 = vunpack.c.l.b16 %v530
        %v1096 = vunpack.c.h.b16 %v530
        %v1097 = vunpack.c.l.b16 %v531
        %v1098 = vunpack.c.h.b16 %v531
        %v1099 = vunpack.c.l.b16 %v532
        %v1100 = vunpack.c.h.b16 %v532
        %v1101 = vunpack.c.l.b16 %v533
        %v1102 = vunpack.c.h.b16 %v533
        %v1103 = vunpack.c.l.b16 %v534
        %v1104 = vunpack.c.h.b16 %v534
        %v1105 = vunpack.c.l.b16 %v535
        %v1106 = vunpack.c.h.b16 %v535
        %v1107 = vunpack.c.l.b16 %v536
        %v1108 = vunpack.c.h.b16 %v536
        %v1109 = vunpack.c.l.b16 %v537
        %v1110 = vunpack.c.h.b16 %v537
        %v1111 = vunpack.c.l.b16 %v538
        %v1112 = vunpack.c.h.b16 %v538
        %v1113 = vunpack.c.l.b16 %v539
        %v1114 = vunpack.c.h.b16 %v539
        %v1115 = vunpack.c.l.b16 %v540
        %v1116 = vunpack.c.h.b16 %v540
        %v1117 = vunpack.c.l.b16 %v541
        %v1118 = vunpack.c.h.b16 %v541
        %v1119 = vunpack.c.l.b16 %v542
        %v1120 = vunpack.c.h.b16 %v542
        %v1121 = vunpack.c.l.b16 %v543
        %v1122 = vunpack.c.h.b16 %v543
        %v1123 = vunpack.c.l.b16 %v544
        %v1124 = vunpack.c.h.b16 %v544
        %v1125 = vunpack.c.l.b16 %v545
        %v1126 = vunpack.c.h.b16 %v545
        %v1127 = vunpack.c.l.b16 %v546
        %v1128 = vunpack.c.h.b16 %v546
        %v1129 = vunpack.c.l.b16 %v547
        %v1130 = vunpack.c.h.b16 %v547
        %v1131 = vunpack.c.l.b16 %v548
        %v1132 = vunpack.c.h.b16 %v548
        %v1133 = vunpack.c.l.b16 %v549
        %v1134 = vunpack.c.h.b16 %v549
        %v1135 = vunpack.c.l.b16 %v550
        %v1136 = vunpack.c.h.b16 %v550
        %v1137 = vunpack.c.l.b16 %v551
        %v1138 = vunpack.c.h.b16 %v551
        %v1139 = vunpack.c.l.b16 %v552
        %v1140 = vunpack.c.h.b16 %v552
        %v1141 = vunpack.c.l.b16 %v553
        %v1142 = vunpack.c.h.b16 %v553
        %v1143 = vunpack.c.l.b16 %v554
        %v1144 = vunpack.c.h.b16 %v554
        %v1145 = vunpack.c.l.b16 %v555
        %v1146 = vunpack.c.h.b16 %v555
        %v1147 = vunpack.c.l.b16 %v556
        %v1148 = vunpack.c.h.b16 %v556
        %v1149 = vunpack.c.l.b16 %v557
        %v1150 = vunpack.c.h.b16 %v557
        %v1151 = vunpack.c.l.b16 %v558
        %v1152 = vunpack.c.h.b16 %v558
        %v1153 = vunpack.c.l.b16 %v559
        %v1154 = vunpack.c.h.b16 %v559
        %v1155 = vunpack.c.l.b16 %v560
        %v1156 = vunpack.c.h.b16 %v560
        %v1157 = vunpack.c.l.b16 %v561
        %v1158 = vunpack.c.h.b16 %v561
        %v1159 = vunpack.c.l.b16 %v562
        %v1160 = vunpack.c.h.b16 %v562
        %v1161 = vunpack.c.l.b16 %v563
        %v1162 = vunpack.c.h.b16 %v563
        %v1163 = vunpack.c.l.b16 %v564
        %v1164 = vunpack.c.h.b16 %v564
        %v1165 = vunpack.c.l.b16 %v565
        %v1166 = vunpack.c.h.b16 %v565
        %v1167 = vunpack.c.l.b16 %v566
        %v1168 = vunpack.c.h.b16 %v566
        %v1169 = vunpack.c.l.b16 %v567
        %v1170 = vunpack.c.h.b16 %v567
        %v1171 = vunpack.c.l.b16 %v568
        %v1172 = vunpack.c.h.b16 %v568
        %v1173 = vunpack.c.l.b16 %v569
        %v1174 = vunpack.c.h.b16 %v569
        %v1175 = vunpack.c.l.b16 %v570
        %v1176 = vunpack.c.h.b16 %v570
        %v1177 = vunpack.c.l.b16 %v571
        %v1178 = vunpack.c.h.b16 %v571
        %v1179 = vunpack.c.l.b16 %v572
        %v1180 = vunpack.c.h.b16 %v572
        %v1181 = vunpack.c.l.b16 %v573
        %v1182 = vunpack.c.h.b16 %v573
        %v1183 = vunpack.c.l.b16 %v574
        %v1184 = vunpack.c.h.b16 %v574
        %v1185 = vunpack.c.l.b16 %v575
        %v1186 = vunpack.c.h.b16 %v575
        %v1187 = vunpack.c.l.b16 %v576
        %v1188 = vunpack.c.h.b16 %v576
        %v1189 = vpack.c.b16 %v801, %v797
        %v1190 = vpack.c.b16 %v802, %v798
        %v1191 = vpack.c.b16 %v803, %v799
        %v1192 = vpack.c.b16 %v804, %v800
        %v1193 = vpack.c.b16 %v809, %v805
        %v1194 = vpack.c.b16 %v810, %v806
        %v1195 = vpack.c.b16 %v811, %v807
        %v1196 = vpack.c.b16 %v812, %v808
        %v1197 = vpack.c.b16 %v817, %v813
        %v1198 = vpack.c.b16 %v818, %v814
        %v1199 = vpack.c.b16 %v819, %v815
        %v1200 = vpack.c.b16 %v820, %v816
        %v1201 = vpack.c.b16 %v825, %v821
        %v1202 = vpack.c.b16 %v826, %v822
        %v1203 = vpack.c.b16 %v827, %v823
        %v1204 = vpack.c.b16 %v828, %v824
        %v1205 = vpack.c.b16 %v833, %v829
        %v1206 = vpack.c.b16 %v834, %v830
        %v1207 = vpack.c.b16 %v835, %v831
        %v1208 = vpack.c.b16 %v836, %v832
        %v1209 = vpack.c.b16 %v841, %v837
        %v1210 = vpack.c.b16 %v842, %v838
        %v1211 = vpack.c.b16 %v843, %v839
        %v1212 = vpack.c.b16 %v844, %v840
        %v1213 = vpack.c.b16 %v849, %v845
        %v1214 = vpack.c.b16 %v850, %v846
        %v1215 = vpack.c.b16 %v851, %v847
        %v1216 = vpack.c.b16 %v852, %v848
        %v1217 = vpack.c.b16 %v857, %v853
        %v1218 = vpack.c.b16 %v858, %v854
        %v1219 = vpack.c.b16 %v859, %v855
        %v1220 = vpack.c.b16 %v860, %v856
        %v1221 = vpack.c.b16 %v865, %v861
        %v1222 = vpack.c.b16 %v866, %v862
        %v1223 = vpack.c.b16 %v867, %v863
        %v1224 = vpack.c.b16 %v868, %v864
        %v1225 = vpack.c.b16 %v873, %v869
        %v1226 = vpack.c.b16 %v874, %v870
        %v1227 = vpack.c.b16 %v875, %v871
        %v1228 = vpack.c.b16 %v876, %v872
        %v1229 = vpack.c.b16 %v881, %v877
        %v1230 = vpack.c.b16 %v882, %v878
        %v1231 = vpack.c.b16 %v883, %v879
        %v1232 = vpack.c.b16 %v884, %v880
        %v1233 = vpack.c.b16 %v889, %v885
        %v1234 = vpack.c.b16 %v890, %v886
        %v1235 = vpack.c.b16 %v891, %v887
        %v1236 = vpack.c.b16 %v892, %v888
        %v1237 = vpack.c.b16 %v897, %v893
        %v1238 = vpack.c.b16 %v898, %v894
        %v1239 = vpack.c.b16 %v899, %v895
        %v1240 = vpack.c.b16 %v900, %v896
        %v1241 = vpack.c.b16 %v905, %v901
        %v1242 = vpack.c.b16 %v906, %v902
        %v1243 = vpack.c.b16 %v907, %v903
        %v1244 = vpack.c.b16 %v908, %v904
        %v1245 = vpack.c.b16 %v913, %v909
        %v1246 = vpack.c.b16 %v914, %v910
        %v1247 = vpack.c.b16 %v915, %v911
        %v1248 = vpack.c.b16 %v916, %v912
        %v1249 = vpack.c.b16 %v921, %v917
        %v1250 = vpack.c.b16 %v922, %v918
        %v1251 = vpack.c.b16 %v923, %v919
        %v1252 = vpack.c.b16 %v924, %v920
        %v1253 = vpack.c.b16 %v929, %v925
        %v1254 = vpack.c.b16 %v930, %v926
        %v1255 = vpack.c.b16 %v931, %v927
        %v1256 = vpack.c.b16 %v932, %v928
        %v1257 = vpack.c.b16 %v937, %v933
        %v1258 = vpack.c.b16 %v938, %v934
        %v1259 = vpack.c.b16 %v939, %v935
        %v1260 = vpack.c.b16 %v940, %v936
        %v1261 = vpack.c.b16 %v945, %v941
        %v1262 = vpack.c.b16 %v946, %v942
        %v1263 = vpack.c.b16 %v947, %v943
        %v1264 = vpack.c.b16 %v948, %v944
        %v1265 = vpack.c.b16 %v953, %v949
        %v1266 = vpack.c.b16 %v954, %v950
        %v1267 = vpack.c.b16 %v955, %v951
        %v1268 = vpack.c.b16 %v956, %v952
        %v1269 = vpack.c.b16 %v961, %v957
        %v1270 = vpack.c.b16 %v962, %v958
        %v1271 = vpack.c.b16 %v963, %v959
        %v1272 = vpack.c.b16 %v964, %v960
        %v1273 = vpack.c.b16 %v969, %v965
        %v1274 = vpack.c.b16 %v970, %v966
        %v1275 = vpack.c.b16 %v971, %v967
        %v1276 = vpack.c.b16 %v972, %v968
        %v1277 = vpack.c.b16 %v977, %v973
        %v1278 = vpack.c.b16 %v978, %v974
        %v1279 = vpack.c.b16 %v979, %v975
        %v1280 = vpack.c.b16 %v980, %v976
        %v1281 = vpack.c.b16 %v985, %v981
        %v1282 = vpack.c.b16 %v986, %v982
        %v1283 = vpack.c.b16 %v987, %v983
        %v1284 = vpack.c.b16 %v988, %v984
        %v1285 = vpack.c.b16 %v993, %v989
        %v1286 = vpack.c.b16 %v994, %v990
        %v1287 = vpack.c.b16 %v995, %v991
        %v1288 = vpack.c.b16 %v996, %v992
        %v1289 = vpack.c.b16 %v1001, %v997
        %v1290 = vpack.c.b16 %v1002, %v998
        %v1291 = vpack.c.b16 %v1003, %v999
        %v1292 = vpack.c.b16 %v1004, %v1000
        %v1293 = vpack.c.b16 %v1009, %v1005
        %v1294 = vpack.c.b16 %v1010, %v1006
        %v1295 = vpack.c.b16 %v1011, %v1007
        %v1296 = vpack.c.b16 %v1012, %v1008
        %v1297 = vpack.c.b16 %v1017, %v1013
        %v1298 = vpack.c.b16 %v1018, %v1014
        %v1299 = vpack.c.b16 %v1019, %v1015
        %v1300 = vpack.c.b16 %v1020, %v1016
        %v1301 = vpack.c.b16 %v1025, %v1021
        %v1302 = vpack.c.b16 %v1026, %v1022
        %v1303 = vpack.c.b16 %v1027, %v1023
        %v1304 = vpack.c.b16 %v1028, %v1024
        %v1305 = vpack.c.b16 %v1033, %v1029
        %v1306 = vpack.c.b16 %v1034, %v1030
        %v1307 = vpack.c.b16 %v1035, %v1031
        %v1308 = vpack.c.b16 %v1036, %v1032
        %v1309 = vpack.c.b16 %v1041, %v1037
        %v1310 = vpack.c.b16 %v1042, %v1038
        %v1311 = vpack.c.b16 %v1043, %v1039
        %v1312 = vpack.c.b16 %v1044, %v1040
        %v1313 = vpack.c.b16 %v1049, %v1045
        %v1314 = vpack.c.b16 %v1050, %v1046
        %v1315 = vpack.c.b16 %v1051, %v1047
        %v1316 = vpack.c.b16 %v1052, %v1048
        %v1317 = vpack.c.b16 %v1057, %v1053
        %v1318 = vpack.c.b16 %v1058, %v1054
        %v1319 = vpack.c.b16 %v1059, %v1055
        %v1320 = vpack.c.b16 %v1060, %v1056
        %v1321 = vpack.c.b16 %v1065, %v1061
        %v1322 = vpack.c.b16 %v1066, %v1062
        %v1323 = vpack.c.b16 %v1067, %v1063
        %v1324 = vpack.c.b16 %v1068, %v1064
        %v1325 = vpack.c.b16 %v1073, %v1069
        %v1326 = vpack.c.b16 %v1074, %v1070
        %v1327 = vpack.c.b16 %v1075, %v1071
        %v1328 = vpack.c.b16 %v1076, %v1072
        %v1329 = vpack.c.b16 %v1081, %v1077
        %v1330 = vpack.c.b16 %v1082, %v1078
        %v1331 = vpack.c.b16 %v1083, %v1079
        %v1332 = vpack.c.b16 %v1084, %v1080
        %v1333 = vpack.c.b16 %v1089, %v1085
        %v1334 = vpack.c.b16 %v1090, %v1086
        %v1335 = vpack.c.b16 %v1091, %v1087
        %v1336 = vpack.c.b16 %v1092, %v1088
        %v1337 = vpack.c.b16 %v1097, %v1093
        %v1338 = vpack.c.b16 %v1098, %v1094
        %v1339 = vpack.c.b16 %v1099, %v1095
        %v1340 = vpack.c.b16 %v1100, %v1096
        %v1341 = vpack.c.b16 %v1105, %v1101
        %v1342 = vpack.c.b16 %v1106, %v1102
        %v1343 = vpack.c.b16 %v1107, %v1103
        %v1344 = vpack.c.b16 %v1108, %v1104
        %v1345 = vpack.c.b16 %v1113, %v1109
        %v1346 = vpack.c.b16 %v1114, %v1110
        %v1347 = vpack.c.b16 %v1115, %v1111
        %v1348 = vpack.c.b16 %v1116, %v1112
        %v1349 = vpack.c.b16 %v1121, %v1117
        %v1350 = vpack.c.b16 %v1122, %v1118
        %v1351 = vpack.c.b16 %v1123, %v1119
        %v1352 = vpack.c.b16 %v1124, %v1120
        %v1353 = vpack.c.b16 %v1129, %v1125
        %v1354 = vpack.c.b16 %v1130, %v1126
        %v1355 = vpack.c.b16 %v1131, %v1127
        %v1356 = vpack.c.b16 %v1132, %v1128
        %v1357 = vpack.c.b16 %v1137, %v1133
        %v1358 = vpack.c.b16 %v1138, %v1134
        %v1359 = vpack.c.b16 %v1139, %v1135
        %v1360 = vpack.c.b16 %v1140, %v1136
        %v1361 = vpack.c.b16 %v1145, %v1141
        %v1362 = vpack.c.b16 %v1146, %v1142
        %v1363 = vpack.c.b16 %v1147, %v1143
        %v1364 = vpack.c.b16 %v1148, %v1144
        %v1365 = vpack.c.b16 %v1153, %v1149
        %v1366 = vpack.c.b16 %v1154, %v1150
        %v1367 = vpack.c.b16 %v1155, %v1151
        %v1368 = vpack.c.b16 %v1156, %v1152
        %v1369 = vpack.c.b16 %v1161, %v1157
        %v1370 = vpack.c.b16 %v1162, %v1158
        %v1371 = vpack.c.b16 %v1163, %v1159
        %v1372 = vpack.c.b16 %v1164, %v1160
        %v1373 = vpack.c.b16 %v1169, %v1165
        %v1374 = vpack.c.b16 %v1170, %v1166
        %v1375 = vpack.c.b16 %v1171, %v1167
        %v1376 = vpack.c.b16 %v1172, %v1168
        %v1377 = vpack.c.b16 %v1177, %v1173
        %v1378 = vpack.c.b16 %v1178, %v1174
        %v1379 = vpack.c.b16 %v1179, %v1175
        %v1380 = vpack.c.b16 %v1180, %v1176
        %v1381 = vpack.c.b16 %v1185, %v1181
        %v1382 = vpack.c.b16 %v1186, %v1182
        %v1383 = vpack.c.b16 %v1187, %v1183
        %v1384 = vpack.c.b16 %v1188, %v1184
        %vm1581 = vcmask 130048
        %v1583 = vsel %vm1581, %v594, 0
        %1585 = vmatpush.bf16.msra.mxu0 %v1217
        %1586 = vmatpush.bf16.msra.mxu0 %v1213
        %1587 = vmatpush.bf16.msra.mxu0 %v1209
        %1588 = vmatpush.bf16.msra.mxu0 %v1205
        %1589 = vmatpush.bf16.msra.mxu0 %v1201
        %1590 = vmatpush.bf16.msra.mxu0 %v1197
        %1591 = vmatpush.bf16.msra.mxu0 %v1193
        %1592 = vmatpush.bf16.msra.mxu0 %v1189
        %1593 = vmatmul.bf16.gmra.mxu0 %v588
        %v1594 = vpop.f32.mrf.mxu0
        %v1595 = vadd.f32 0.0, %v1594
        %v1596 = vpop.f32.mrf.mxu0
        %1597 = vdwg.mxu0
        %1598 = vmatpush.bf16.msra.mxu0 %v1249
        %1599 = vmatpush.bf16.msra.mxu0 %v1245
        %1600 = vmatpush.bf16.msra.mxu0 %v1241
        %1601 = vmatpush.bf16.msra.mxu0 %v1237
        %1602 = vmatpush.bf16.msra.mxu0 %v1233
        %1603 = vmatpush.bf16.msra.mxu0 %v1229
        %1604 = vmatpush.bf16.msra.mxu0 %v1225
        %1605 = vmatpush.bf16.msra.mxu0 %v1221
        %1606 = vmatmul.bf16.gmra.mxu0 %v589
        %v1607 = vpop.f32.mrf.mxu0
        %v1608 = vadd.f32 %v1595, %v1607
        %v1609 = vpop.f32.mrf.mxu0
        %1610 = vdwg.mxu0
        %1611 = vmatpush.bf16.msra.mxu0 %v1281
        %1612 = vmatpush.bf16.msra.mxu0 %v1277
        %1613 = vmatpush.bf16.msra.mxu0 %v1273
        %1614 = vmatpush.bf16.msra.mxu0 %v1269
        %1615 = vmatpush.bf16.msra.mxu0 %v1265
        %1616 = vmatpush.bf16.msra.mxu0 %v1261
        %1617 = vmatpush.bf16.msra.mxu0 %v1257
        %1618 = vmatpush.bf16.msra.mxu0 %v1253
        %1619 = vmatmul.bf16.gmra.mxu0 %v590
        %v1620 = vpop.f32.mrf.mxu0
        %v1621 = vadd.f32 %v1608, %v1620
        %v1622 = vpop.f32.mrf.mxu0
        %1623 = vdwg.mxu0
        %1624 = vmatpush.bf16.msra.mxu0 %v1313
        %1625 = vmatpush.bf16.msra.mxu0 %v1309
        %1626 = vmatpush.bf16.msra.mxu0 %v1305
        %1627 = vmatpush.bf16.msra.mxu0 %v1301
        %1628 = vmatpush.bf16.msra.mxu0 %v1297
        %1629 = vmatpush.bf16.msra.mxu0 %v1293
        %1630 = vmatpush.bf16.msra.mxu0 %v1289
        %1631 = vmatpush.bf16.msra.mxu0 %v1285
        %1632 = vmatmul.bf16.gmra.mxu0 %v591
        %v1633 = vpop.f32.mrf.mxu0
        %v1634 = vadd.f32 %v1621, %v1633
        %v1635 = vpop.f32.mrf.mxu0
        %1636 = vdwg.mxu0
        %1637 = vmatpush.bf16.msra.mxu0 %v1345
        %1638 = vmatpush.bf16.msra.mxu0 %v1341
        %1639 = vmatpush.bf16.msra.mxu0 %v1337
        %1640 = vmatpush.bf16.msra.mxu0 %v1333
        %1641 = vmatpush.bf16.msra.mxu0 %v1329
        %1642 = vmatpush.bf16.msra.mxu0 %v1325
        %1643 = vmatpush.bf16.msra.mxu0 %v1321
        %1644 = vmatpush.bf16.msra.mxu0 %v1317
        %1645 = vmatmul.bf16.gmra.mxu0 %v592
        %v1646 = vpop.f32.mrf.mxu0
        %v1647 = vadd.f32 %v1634, %v1646
        %v1648 = vpop.f32.mrf.mxu0
        %1649 = vdwg.mxu0
        %1650 = vmatpush.bf16.msra.mxu0 %v1377
        %1651 = vmatpush.bf16.msra.mxu0 %v1373
        %1652 = vmatpush.bf16.msra.mxu0 %v1369
        %1653 = vmatpush.bf16.msra.mxu0 %v1365
        %1654 = vmatpush.bf16.msra.mxu0 %v1361
        %1655 = vmatpush.bf16.msra.mxu0 %v1357
        %1656 = vmatpush.bf16.msra.mxu0 %v1353
        %1657 = vmatpush.bf16.msra.mxu0 %v1349
        %1658 = vmatmul.bf16.gmra.mxu0 %v593
        %v1659 = vpop.f32.mrf.mxu0
        %v1660 = vadd.f32 %v1647, %v1659
        %v1661 = vpop.f32.mrf.mxu0
        %1662 = vdwg.mxu0
        %1663 = vmatpush.bf16.msra.mxu0 0
        %1664 = vmatpush.bf16.msra.mxu0 0
        %1665 = vmatpush.bf16.msra.mxu0 0
        %1666 = vmatpush.bf16.msra.mxu0 0
        %1667 = vmatpush.bf16.msra.mxu0 0
        %1668 = vmatpush.bf16.msra.mxu0 0
        %1669 = vmatpush.bf16.msra.mxu0 0
        %1670 = vmatpush.bf16.msra.mxu0 %v1381
        %1671 = vmatmul.bf16.gmra.mxu0 %v1583
        %v1672 = vpop.f32.mrf.mxu0
        %v1673 = vadd.f32 %v1660, %v1672
        %v1674 = vpop.f32.mrf.mxu0
        %1675 = vdwg.mxu0
        %1676 = vmatpush.bf16.msra.mxu0 %v1218
        %1677 = vmatpush.bf16.msra.mxu0 %v1214
        %1678 = vmatpush.bf16.msra.mxu0 %v1210
        %1679 = vmatpush.bf16.msra.mxu0 %v1206
        %1680 = vmatpush.bf16.msra.mxu0 %v1202
        %1681 = vmatpush.bf16.msra.mxu0 %v1198
        %1682 = vmatpush.bf16.msra.mxu0 %v1194
        %1683 = vmatpush.bf16.msra.mxu0 %v1190
        %1684 = vmatmul.bf16.gmra.mxu0 %v588
        %v1685 = vpop.f32.mrf.mxu0
        %v1686 = vadd.f32 0.0, %v1685
        %v1687 = vpop.f32.mrf.mxu0
        %1688 = vdwg.mxu0
        %1689 = vmatpush.bf16.msra.mxu0 %v1250
        %1690 = vmatpush.bf16.msra.mxu0 %v1246
        %1691 = vmatpush.bf16.msra.mxu0 %v1242
        %1692 = vmatpush.bf16.msra.mxu0 %v1238
        %1693 = vmatpush.bf16.msra.mxu0 %v1234
        %1694 = vmatpush.bf16.msra.mxu0 %v1230
        %1695 = vmatpush.bf16.msra.mxu0 %v1226
        %1696 = vmatpush.bf16.msra.mxu0 %v1222
        %1697 = vmatmul.bf16.gmra.mxu0 %v589
        %v1698 = vpop.f32.mrf.mxu0
        %v1699 = vadd.f32 %v1686, %v1698
        %v1700 = vpop.f32.mrf.mxu0
        %1701 = vdwg.mxu0
        %1702 = vmatpush.bf16.msra.mxu0 %v1282
        %1703 = vmatpush.bf16.msra.mxu0 %v1278
        %1704 = vmatpush.bf16.msra.mxu0 %v1274
        %1705 = vmatpush.bf16.msra.mxu0 %v1270
        %1706 = vmatpush.bf16.msra.mxu0 %v1266
        %1707 = vmatpush.bf16.msra.mxu0 %v1262
        %1708 = vmatpush.bf16.msra.mxu0 %v1258
        %1709 = vmatpush.bf16.msra.mxu0 %v1254
        %1710 = vmatmul.bf16.gmra.mxu0 %v590
        %v1711 = vpop.f32.mrf.mxu0
        %v1712 = vadd.f32 %v1699, %v1711
        %v1713 = vpop.f32.mrf.mxu0
        %1714 = vdwg.mxu0
        %1715 = vmatpush.bf16.msra.mxu0 %v1314
        %1716 = vmatpush.bf16.msra.mxu0 %v1310
        %1717 = vmatpush.bf16.msra.mxu0 %v1306
        %1718 = vmatpush.bf16.msra.mxu0 %v1302
        %1719 = vmatpush.bf16.msra.mxu0 %v1298
        %1720 = vmatpush.bf16.msra.mxu0 %v1294
        %1721 = vmatpush.bf16.msra.mxu0 %v1290
        %1722 = vmatpush.bf16.msra.mxu0 %v1286
        %1723 = vmatmul.bf16.gmra.mxu0 %v591
        %v1724 = vpop.f32.mrf.mxu0
        %v1725 = vadd.f32 %v1712, %v1724
        %v1726 = vpop.f32.mrf.mxu0
        %1727 = vdwg.mxu0
        %1728 = vmatpush.bf16.msra.mxu0 %v1346
        %1729 = vmatpush.bf16.msra.mxu0 %v1342
        %1730 = vmatpush.bf16.msra.mxu0 %v1338
        %1731 = vmatpush.bf16.msra.mxu0 %v1334
        %1732 = vmatpush.bf16.msra.mxu0 %v1330
        %1733 = vmatpush.bf16.msra.mxu0 %v1326
        %1734 = vmatpush.bf16.msra.mxu0 %v1322
        %1735 = vmatpush.bf16.msra.mxu0 %v1318
        %1736 = vmatmul.bf16.gmra.mxu0 %v592
        %v1737 = vpop.f32.mrf.mxu0
        %v1738 = vadd.f32 %v1725, %v1737
        %v1739 = vpop.f32.mrf.mxu0
        %1740 = vdwg.mxu0
        %1741 = vmatpush.bf16.msra.mxu0 %v1378
        %1742 = vmatpush.bf16.msra.mxu0 %v1374
        %1743 = vmatpush.bf16.msra.mxu0 %v1370
        %1744 = vmatpush.bf16.msra.mxu0 %v1366
        %1745 = vmatpush.bf16.msra.mxu0 %v1362
        %1746 = vmatpush.bf16.msra.mxu0 %v1358
        %1747 = vmatpush.bf16.msra.mxu0 %v1354
        %1748 = vmatpush.bf16.msra.mxu0 %v1350
        %1749 = vmatmul.bf16.gmra.mxu0 %v593
        %v1750 = vpop.f32.mrf.mxu0
        %v1751 = vadd.f32 %v1738, %v1750
        %v1752 = vpop.f32.mrf.mxu0
        %1753 = vdwg.mxu0
        %1754 = vmatpush.bf16.msra.mxu0 0
        %1755 = vmatpush.bf16.msra.mxu0 0
        %1756 = vmatpush.bf16.msra.mxu0 0
        %1757 = vmatpush.bf16.msra.mxu0 0
        %1758 = vmatpush.bf16.msra.mxu0 0
        %1759 = vmatpush.bf16.msra.mxu0 0
        %1760 = vmatpush.bf16.msra.mxu0 0
        %1761 = vmatpush.bf16.msra.mxu0 %v1382
        %1762 = vmatmul.bf16.gmra.mxu0 %v1583
        %v1763 = vpop.f32.mrf.mxu0
        %v1764 = vadd.f32 %v1751, %v1763
        %v1765 = vpop.f32.mrf.mxu0
        %1766 = vdwg.mxu0
        %1767 = vmatpush.bf16.msra.mxu0 %v1219
        %1768 = vmatpush.bf16.msra.mxu0 %v1215
        %1769 = vmatpush.bf16.msra.mxu0 %v1211
        %1770 = vmatpush.bf16.msra.mxu0 %v1207
        %1771 = vmatpush.bf16.msra.mxu0 %v1203
        %1772 = vmatpush.bf16.msra.mxu0 %v1199
        %1773 = vmatpush.bf16.msra.mxu0 %v1195
        %1774 = vmatpush.bf16.msra.mxu0 %v1191
        %1775 = vmatmul.bf16.gmra.mxu0 %v588
        %v1776 = vpop.f32.mrf.mxu0
        %v1777 = vadd.f32 0.0, %v1776
        %v1778 = vpop.f32.mrf.mxu0
        %1779 = vdwg.mxu0
        %1780 = vmatpush.bf16.msra.mxu0 %v1251
        %1781 = vmatpush.bf16.msra.mxu0 %v1247
        %1782 = vmatpush.bf16.msra.mxu0 %v1243
        %1783 = vmatpush.bf16.msra.mxu0 %v1239
        %1784 = vmatpush.bf16.msra.mxu0 %v1235
        %1785 = vmatpush.bf16.msra.mxu0 %v1231
        %1786 = vmatpush.bf16.msra.mxu0 %v1227
        %1787 = vmatpush.bf16.msra.mxu0 %v1223
        %1788 = vmatmul.bf16.gmra.mxu0 %v589
        %v1789 = vpop.f32.mrf.mxu0
        %v1790 = vadd.f32 %v1777, %v1789
        %v1791 = vpop.f32.mrf.mxu0
        %1792 = vdwg.mxu0
        %1793 = vmatpush.bf16.msra.mxu0 %v1283
        %1794 = vmatpush.bf16.msra.mxu0 %v1279
        %1795 = vmatpush.bf16.msra.mxu0 %v1275
        %1796 = vmatpush.bf16.msra.mxu0 %v1271
        %1797 = vmatpush.bf16.msra.mxu0 %v1267
        %1798 = vmatpush.bf16.msra.mxu0 %v1263
        %1799 = vmatpush.bf16.msra.mxu0 %v1259
        %1800 = vmatpush.bf16.msra.mxu0 %v1255
        %1801 = vmatmul.bf16.gmra.mxu0 %v590
        %v1802 = vpop.f32.mrf.mxu0
        %v1803 = vadd.f32 %v1790, %v1802
        %v1804 = vpop.f32.mrf.mxu0
        %1805 = vdwg.mxu0
        %1806 = vmatpush.bf16.msra.mxu0 %v1315
        %1807 = vmatpush.bf16.msra.mxu0 %v1311
        %1808 = vmatpush.bf16.msra.mxu0 %v1307
        %1809 = vmatpush.bf16.msra.mxu0 %v1303
        %1810 = vmatpush.bf16.msra.mxu0 %v1299
        %1811 = vmatpush.bf16.msra.mxu0 %v1295
        %1812 = vmatpush.bf16.msra.mxu0 %v1291
        %1813 = vmatpush.bf16.msra.mxu0 %v1287
        %1814 = vmatmul.bf16.gmra.mxu0 %v591
        %v1815 = vpop.f32.mrf.mxu0
        %v1816 = vadd.f32 %v1803, %v1815
        %v1817 = vpop.f32.mrf.mxu0
        %1818 = vdwg.mxu0
        %1819 = vmatpush.bf16.msra.mxu0 %v1347
        %1820 = vmatpush.bf16.msra.mxu0 %v1343
        %1821 = vmatpush.bf16.msra.mxu0 %v1339
        %1822 = vmatpush.bf16.msra.mxu0 %v1335
        %1823 = vmatpush.bf16.msra.mxu0 %v1331
        %1824 = vmatpush.bf16.msra.mxu0 %v1327
        %1825 = vmatpush.bf16.msra.mxu0 %v1323
        %1826 = vmatpush.bf16.msra.mxu0 %v1319
        %1827 = vmatmul.bf16.gmra.mxu0 %v592
        %v1828 = vpop.f32.mrf.mxu0
        %v1829 = vadd.f32 %v1816, %v1828
        %v1830 = vpop.f32.mrf.mxu0
        %1831 = vdwg.mxu0
        %1832 = vmatpush.bf16.msra.mxu0 %v1379
        %1833 = vmatpush.bf16.msra.mxu0 %v1375
        %1834 = vmatpush.bf16.msra.mxu0 %v1371
        %1835 = vmatpush.bf16.msra.mxu0 %v1367
        %1836 = vmatpush.bf16.msra.mxu0 %v1363
        %1837 = vmatpush.bf16.msra.mxu0 %v1359
        %1838 = vmatpush.bf16.msra.mxu0 %v1355
        %1839 = vmatpush.bf16.msra.mxu0 %v1351
        %1840 = vmatmul.bf16.gmra.mxu0 %v593
        %v1841 = vpop.f32.mrf.mxu0
        %v1842 = vadd.f32 %v1829, %v1841
        %v1843 = vpop.f32.mrf.mxu0
        %1844 = vdwg.mxu0
        %1845 = vmatpush.bf16.msra.mxu0 0
        %1846 = vmatpush.bf16.msra.mxu0 0
        %1847 = vmatpush.bf16.msra.mxu0 0
        %1848 = vmatpush.bf16.msra.mxu0 0
        %1849 = vmatpush.bf16.msra.mxu0 0
        %1850 = vmatpush.bf16.msra.mxu0 0
        %1851 = vmatpush.bf16.msra.mxu0 0
        %1852 = vmatpush.bf16.msra.mxu0 %v1383
        %1853 = vmatmul.bf16.gmra.mxu0 %v1583
        %v1854 = vpop.f32.mrf.mxu0
        %v1855 = vadd.f32 %v1842, %v1854
        %v1856 = vpop.f32.mrf.mxu0
        %1857 = vdwg.mxu0
        %1858 = vmatpush.bf16.msra.mxu0 %v1220
        %1859 = vmatpush.bf16.msra.mxu0 %v1216
        %1860 = vmatpush.bf16.msra.mxu0 %v1212
        %1861 = vmatpush.bf16.msra.mxu0 %v1208
        %1862 = vmatpush.bf16.msra.mxu0 %v1204
        %1863 = vmatpush.bf16.msra.mxu0 %v1200
        %1864 = vmatpush.bf16.msra.mxu0 %v1196
        %1865 = vmatpush.bf16.msra.mxu0 %v1192
        %1866 = vmatmul.bf16.gmra.mxu0 %v588
        %v1867 = vpop.f32.mrf.mxu0
        %v1868 = vadd.f32 0.0, %v1867
        %v1869 = vpop.f32.mrf.mxu0
        %1870 = vdwg.mxu0
        %1871 = vmatpush.bf16.msra.mxu0 %v1252
        %1872 = vmatpush.bf16.msra.mxu0 %v1248
        %1873 = vmatpush.bf16.msra.mxu0 %v1244
        %1874 = vmatpush.bf16.msra.mxu0 %v1240
        %1875 = vmatpush.bf16.msra.mxu0 %v1236
        %1876 = vmatpush.bf16.msra.mxu0 %v1232
        %1877 = vmatpush.bf16.msra.mxu0 %v1228
        %1878 = vmatpush.bf16.msra.mxu0 %v1224
        %1879 = vmatmul.bf16.gmra.mxu0 %v589
        %v1880 = vpop.f32.mrf.mxu0
        %v1881 = vadd.f32 %v1868, %v1880
        %v1882 = vpop.f32.mrf.mxu0
        %1883 = vdwg.mxu0
        %1884 = vmatpush.bf16.msra.mxu0 %v1284
        %1885 = vmatpush.bf16.msra.mxu0 %v1280
        %1886 = vmatpush.bf16.msra.mxu0 %v1276
        %1887 = vmatpush.bf16.msra.mxu0 %v1272
        %1888 = vmatpush.bf16.msra.mxu0 %v1268
        %1889 = vmatpush.bf16.msra.mxu0 %v1264
        %1890 = vmatpush.bf16.msra.mxu0 %v1260
        %1891 = vmatpush.bf16.msra.mxu0 %v1256
        %1892 = vmatmul.bf16.gmra.mxu0 %v590
        %v1893 = vpop.f32.mrf.mxu0
        %v1894 = vadd.f32 %v1881, %v1893
        %v1895 = vpop.f32.mrf.mxu0
        %1896 = vdwg.mxu0
        %1897 = vmatpush.bf16.msra.mxu0 %v1316
        %1898 = vmatpush.bf16.msra.mxu0 %v1312
        %1899 = vmatpush.bf16.msra.mxu0 %v1308
        %1900 = vmatpush.bf16.msra.mxu0 %v1304
        %1901 = vmatpush.bf16.msra.mxu0 %v1300
        %1902 = vmatpush.bf16.msra.mxu0 %v1296
        %1903 = vmatpush.bf16.msra.mxu0 %v1292
        %1904 = vmatpush.bf16.msra.mxu0 %v1288
        %1905 = vmatmul.bf16.gmra.mxu0 %v591
        %v1906 = vpop.f32.mrf.mxu0
        %v1907 = vadd.f32 %v1894, %v1906
        %v1908 = vpop.f32.mrf.mxu0
        %1909 = vdwg.mxu0
        %1910 = vmatpush.bf16.msra.mxu0 %v1348
        %1911 = vmatpush.bf16.msra.mxu0 %v1344
        %1912 = vmatpush.bf16.msra.mxu0 %v1340
        %1913 = vmatpush.bf16.msra.mxu0 %v1336
        %1914 = vmatpush.bf16.msra.mxu0 %v1332
        %1915 = vmatpush.bf16.msra.mxu0 %v1328
        %1916 = vmatpush.bf16.msra.mxu0 %v1324
        %1917 = vmatpush.bf16.msra.mxu0 %v1320
        %1918 = vmatmul.bf16.gmra.mxu0 %v592
        %v1919 = vpop.f32.mrf.mxu0
        %v1920 = vadd.f32 %v1907, %v1919
        %v1921 = vpop.f32.mrf.mxu0
        %1922 = vdwg.mxu0
        %1923 = vmatpush.bf16.msra.mxu0 %v1380
        %1924 = vmatpush.bf16.msra.mxu0 %v1376
        %1925 = vmatpush.bf16.msra.mxu0 %v1372
        %1926 = vmatpush.bf16.msra.mxu0 %v1368
        %1927 = vmatpush.bf16.msra.mxu0 %v1364
        %1928 = vmatpush.bf16.msra.mxu0 %v1360
        %1929 = vmatpush.bf16.msra.mxu0 %v1356
        %1930 = vmatpush.bf16.msra.mxu0 %v1352
        %1931 = vmatmul.bf16.gmra.mxu0 %v593
        %v1932 = vpop.f32.mrf.mxu0
        %v1933 = vadd.f32 %v1920, %v1932
        %v1934 = vpop.f32.mrf.mxu0
        %1935 = vdwg.mxu0
        %1936 = vmatpush.bf16.msra.mxu0 0
        %1937 = vmatpush.bf16.msra.mxu0 0
        %1938 = vmatpush.bf16.msra.mxu0 0
        %1939 = vmatpush.bf16.msra.mxu0 0
        %1940 = vmatpush.bf16.msra.mxu0 0
        %1941 = vmatpush.bf16.msra.mxu0 0
        %1942 = vmatpush.bf16.msra.mxu0 0
        %1943 = vmatpush.bf16.msra.mxu0 %v1384
        %1944 = vmatmul.bf16.gmra.mxu0 %v1583
        %v1945 = vpop.f32.mrf.mxu0
        %v1946 = vadd.f32 %v1933, %v1945
        %v1947 = vpop.f32.mrf.mxu0
        %1948 = vdwg.mxu0
        %v1949 = vpack.c.bf16 %v1764, %v1673
        %v1950 = vpack.c.bf16 %v1946, %v1855
        %v1951 = vld [vmem:[#allocation7] sm:$0xf]
        %1953 = vst [vmem:[#allocation1] ss:$9 sm:$0xff] %v1951
        %v1954 = vld [vmem:[#allocation1] sm:$0xff]
        %v1955 = vld [vmem:[#allocation1 + $0x9] sm:$0xff]
        %v1956 = vld [vmem:[#allocation1 + $0x12] sm:$0xff]
        %v1957 = vld [vmem:[#allocation1 + $0x1b] sm:$0xff]
        %v1958 = vpack.i.b16 %v1954, %v1954
        %v1960 = vperm.slane %v1958, 0
        %v1961 = vpack.i.b16 %v1955, %v1955
        %v1963 = vperm.slane %v1961, 0
        %v1964 = vpack.i.b16 %v1956, %v1956
        %v1966 = vperm.slane %v1964, 0
        %v1967 = vpack.i.b16 %v1957, %v1957
        %v1969 = vperm.slane %v1967, 0
        %v1970 = vunpack.c.l.bf16 %v1949
        %v1971 = vunpack.c.h.bf16 %v1949
        %v1972 = vunpack.c.l.bf16 %v1950
        %v1973 = vunpack.c.h.bf16 %v1950
        %v1974 = vunpack.c.l.bf16 %v1960
        %v1975 = vunpack.c.l.bf16 %v1963
        %v1976 = vunpack.c.l.bf16 %v1966
        %v1977 = vunpack.c.l.bf16 %v1969
        %v1978 = vadd.f32 %v1970, %v1974
        %v1979 = vadd.f32 %v1971, %v1975
        %v1980 = vadd.f32 %v1972, %v1976
        %v1981 = vadd.f32 %v1973, %v1977
        %v1982 = vpack.c.bf16 %v1979, %v1978
        %v1983 = vpack.c.bf16 %v1981, %v1980
        %v1984 = vunpack.c.l.bf16 %v1982
        %v1985 = vunpack.c.h.bf16 %v1982
        %v1986 = vunpack.c.l.bf16 %v1983
        %v1987 = vunpack.c.h.bf16 %v1983
        %v1988 = vmax.f32 %v1984, 0.0
        %v1989 = vmax.f32 %v1985, 0.0
        %v1990 = vmax.f32 %v1986, 0.0
        %v1991 = vmax.f32 %v1987, 0.0
        %v1992 = vpack.c.bf16 %v1988, %v1988
        %v1993 = vpack.c.bf16 %v1989, %v1989
        %v1994 = vpack.c.bf16 %v1990, %v1990
        %v1995 = vpack.c.bf16 %v1991, %v1991
        %v1996 = vld [vmem:[#allocation8] sm:$0xff]
        %v1997 = vld [vmem:[#allocation8 + $0x8] sm:$0xff]
        %v1998 = vld [vmem:[#allocation8 + $0x10] sm:$0xff]
        %v1999 = vld [vmem:[#allocation8 + $0x18] sm:$0xff]
        %v2000 = vld [vmem:[#allocation8 + $0x20] sm:$0xff]
        %v2001 = vld [vmem:[#allocation8 + $0x28] sm:$0xff]
        %v2002 = vld [vmem:[#allocation8 + $0x30] sm:$0xff]
        %v2003 = vld [vmem:[#allocation8 + $0x38] sm:$0xff]
        %v2004 = vld [vmem:[#allocation8 + $0x40] sm:$0xff]
        %v2005 = vld [vmem:[#allocation8 + $0x48] sm:$0xff]
        %v2006 = vld [vmem:[#allocation8 + $0x50] sm:$0xff]
        %v2007 = vld [vmem:[#allocation8 + $0x58] sm:$0xff]
        %v2008 = vld [vmem:[#allocation8 + $0x60] sm:$0xff]
        %v2009 = vld [vmem:[#allocation8 + $0x68] sm:$0xff]
        %v2010 = vld [vmem:[#allocation8 + $0x70] sm:$0xff]
        %v2011 = vld [vmem:[#allocation8 + $0x78] sm:$0xff]
        %v2012 = vld [vmem:[#allocation8 + $0x80] sm:$0xff]
        %v2013 = vld [vmem:[#allocation8 + $0x88] sm:$0xff]
        %v2014 = vld [vmem:[#allocation8 + $0x90] sm:$0xff]
        %v2015 = vld [vmem:[#allocation8 + $0x98] sm:$0xff]
        %v2016 = vld [vmem:[#allocation8 + $0xa0] sm:$0xff]
        %v2017 = vld [vmem:[#allocation8 + $0xa8] sm:$0xff]
        %v2018 = vld [vmem:[#allocation8 + $0xb0] sm:$0xff]
        %v2019 = vld [vmem:[#allocation8 + $0xb8] sm:$0xff]
        %v2020 = vld [vmem:[#allocation8 + $0xc0] sm:$0xff]
        %v2021 = vld [vmem:[#allocation8 + $0xc8] sm:$0xff]
        %v2022 = vld [vmem:[#allocation8 + $0xd0] sm:$0xff]
        %v2023 = vld [vmem:[#allocation8 + $0xd8] sm:$0xff]
        %v2024 = vld [vmem:[#allocation8 + $0xe0] sm:$0xff]
        %v2025 = vld [vmem:[#allocation8 + $0xe8] sm:$0xff]
        %v2026 = vld [vmem:[#allocation8 + $0xf0] sm:$0xff]
        %v2027 = vld [vmem:[#allocation8 + $0xf8] sm:$0xff]
        %v2028 = vld [vmem:[#allocation8 + $0x100] sm:$0xff]
        %v2029 = vld [vmem:[#allocation8 + $0x108] sm:$0xff]
        %v2030 = vld [vmem:[#allocation8 + $0x110] sm:$0xff]
        %v2031 = vld [vmem:[#allocation8 + $0x118] sm:$0xff]
        %v2032 = vld [vmem:[#allocation8 + $0x120] sm:$0xff]
        %v2033 = vld [vmem:[#allocation8 + $0x128] sm:$0xff]
        %v2034 = vld [vmem:[#allocation8 + $0x130] sm:$0xff]
        %v2035 = vld [vmem:[#allocation8 + $0x138] sm:$0xff]
        %v2036 = vld [vmem:[#allocation8 + $0x140] sm:$0xff]
        %v2037 = vld [vmem:[#allocation8 + $0x148] sm:$0xff]
        %v2038 = vld [vmem:[#allocation8 + $0x150] sm:$0xff]
        %v2039 = vld [vmem:[#allocation8 + $0x158] sm:$0xff]
        %v2040 = vld [vmem:[#allocation8 + $0x160] sm:$0xff]
        %v2041 = vld [vmem:[#allocation8 + $0x168] sm:$0xff]
        %v2042 = vld [vmem:[#allocation8 + $0x170] sm:$0xff]
        %v2043 = vld [vmem:[#allocation8 + $0x178] sm:$0xff]
        %v2044 = vld [vmem:[#allocation8 + $0x180] sm:$0xff]
        %v2045 = vld [vmem:[#allocation8 + $0x188] sm:$0xff]
        %v2046 = vld [vmem:[#allocation8 + $0x190] sm:$0xff]
        %v2047 = vld [vmem:[#allocation8 + $0x198] sm:$0xff]
        %v2048 = vld [vmem:[#allocation8 + $0x1a0] sm:$0xff]
        %v2049 = vld [vmem:[#allocation8 + $0x1a8] sm:$0xff]
        %v2050 = vld [vmem:[#allocation8 + $0x1b0] sm:$0xff]
        %v2051 = vld [vmem:[#allocation8 + $0x1b8] sm:$0xff]
        %v2052 = vld [vmem:[#allocation8 + $0x1c0] sm:$0xff]
        %v2053 = vld [vmem:[#allocation8 + $0x1c8] sm:$0xff]
        %v2054 = vld [vmem:[#allocation8 + $0x1d0] sm:$0xff]
        %v2055 = vld [vmem:[#allocation8 + $0x1d8] sm:$0xff]
        %v2056 = vld [vmem:[#allocation8 + $0x1e0] sm:$0xff]
        %v2057 = vld [vmem:[#allocation8 + $0x1e8] sm:$0xff]
        %v2058 = vld [vmem:[#allocation8 + $0x1f0] sm:$0xff]
        %v2059 = vld [vmem:[#allocation8 + $0x1f8] sm:$0xff]
        %v2060 = vld [vmem:[#allocation8 + $0x200] sm:$0xff]
        %v2061 = vld [vmem:[#allocation8 + $0x208] sm:$0xff]
        %v2062 = vld [vmem:[#allocation8 + $0x210] sm:$0xff]
        %v2063 = vld [vmem:[#allocation8 + $0x218] sm:$0xff]
        %v2064 = vld [vmem:[#allocation8 + $0x220] sm:$0xff]
        %v2065 = vld [vmem:[#allocation8 + $0x228] sm:$0xff]
        %v2066 = vld [vmem:[#allocation8 + $0x230] sm:$0xff]
        %v2067 = vld [vmem:[#allocation8 + $0x238] sm:$0xff]
        %v2068 = vld [vmem:[#allocation8 + $0x240] sm:$0xff]
        %v2069 = vld [vmem:[#allocation8 + $0x248] sm:$0xff]
        %v2070 = vld [vmem:[#allocation8 + $0x250] sm:$0xff]
        %v2071 = vld [vmem:[#allocation8 + $0x258] sm:$0xff]
        %v2072 = vld [vmem:[#allocation8 + $0x260] sm:$0xff]
        %v2073 = vld [vmem:[#allocation8 + $0x268] sm:$0xff]
        %v2074 = vld [vmem:[#allocation8 + $0x270] sm:$0xff]
        %v2075 = vld [vmem:[#allocation8 + $0x278] sm:$0xff]
        %v2076 = vld [vmem:[#allocation8 + $0x280] sm:$0xff]
        %v2077 = vld [vmem:[#allocation8 + $0x288] sm:$0xff]
        %v2078 = vld [vmem:[#allocation8 + $0x290] sm:$0xff]
        %v2079 = vld [vmem:[#allocation8 + $0x298] sm:$0xff]
        %v2080 = vld [vmem:[#allocation8 + $0x2a0] sm:$0xff]
        %v2081 = vld [vmem:[#allocation8 + $0x2a8] sm:$0xff]
        %v2082 = vld [vmem:[#allocation8 + $0x2b0] sm:$0xff]
        %v2083 = vld [vmem:[#allocation8 + $0x2b8] sm:$0xff]
        %v2084 = vld [vmem:[#allocation8 + $0x2c0] sm:$0xff]
        %v2085 = vld [vmem:[#allocation8 + $0x2c8] sm:$0xff]
        %v2086 = vld [vmem:[#allocation8 + $0x2d0] sm:$0xff]
        %v2087 = vld [vmem:[#allocation8 + $0x2d8] sm:$0xff]
        %v2088 = vld [vmem:[#allocation8 + $0x2e0] sm:$0xff]
        %v2089 = vld [vmem:[#allocation8 + $0x2e8] sm:$0xff]
        %v2090 = vld [vmem:[#allocation8 + $0x2f0] sm:$0xff]
        %v2091 = vld [vmem:[#allocation8 + $0x2f8] sm:$0xff]
        %v2092 = vld [vmem:[#allocation8 + $0x300] sm:$0xff]
        %v2093 = vld [vmem:[#allocation8 + $0x308] sm:$0xff]
        %v2094 = vld [vmem:[#allocation8 + $0x310] sm:$0xff]
        %v2095 = vld [vmem:[#allocation8 + $0x318] sm:$0xff]
        %v2096 = vld [vmem:[#allocation8 + $0x320] sm:$0xff]
        %v2097 = vld [vmem:[#allocation8 + $0x328] sm:$0xff]
        %v2098 = vld [vmem:[#allocation8 + $0x330] sm:$0xff]
        %v2099 = vld [vmem:[#allocation8 + $0x338] sm:$0xff]
        %v2100 = vld [vmem:[#allocation8 + $0x340] sm:$0xff]
        %v2101 = vld [vmem:[#allocation8 + $0x348] sm:$0xff]
        %v2102 = vld [vmem:[#allocation8 + $0x350] sm:$0xff]
        %v2103 = vld [vmem:[#allocation8 + $0x358] sm:$0xff]
        %v2104 = vld [vmem:[#allocation8 + $0x360] sm:$0xff]
        %v2105 = vld [vmem:[#allocation8 + $0x368] sm:$0xff]
        %v2106 = vld [vmem:[#allocation8 + $0x370] sm:$0xff]
        %v2107 = vld [vmem:[#allocation8 + $0x378] sm:$0xff]
        %v2108 = vld [vmem:[#allocation8 + $0x380] sm:$0xff]
        %v2109 = vld [vmem:[#allocation8 + $0x388] sm:$0xff]
        %v2110 = vld [vmem:[#allocation8 + $0x390] sm:$0xff]
        %v2111 = vld [vmem:[#allocation8 + $0x398] sm:$0xff]
        %v2112 = vld [vmem:[#allocation8 + $0x3a0] sm:$0xff]
        %v2113 = vld [vmem:[#allocation8 + $0x3a8] sm:$0xff]
        %v2114 = vld [vmem:[#allocation8 + $0x3b0] sm:$0xff]
        %v2115 = vld [vmem:[#allocation8 + $0x3b8] sm:$0xff]
        %v2116 = vld [vmem:[#allocation8 + $0x3c0] sm:$0xff]
        %v2117 = vld [vmem:[#allocation8 + $0x3c8] sm:$0xff]
        %v2118 = vld [vmem:[#allocation8 + $0x3d0] sm:$0xff]
        %v2119 = vld [vmem:[#allocation8 + $0x3d8] sm:$0xff]
        %v2120 = vld [vmem:[#allocation8 + $0x3e0] sm:$0xff]
        %v2121 = vld [vmem:[#allocation8 + $0x3e8] sm:$0xff]
        %v2122 = vld [vmem:[#allocation8 + $0x3f0] sm:$0xff]
        %v2123 = vld [vmem:[#allocation8 + $0x3f8] sm:$0xff]
        %v2252 = vunpack.c.l.b16 %v1996
        %v2253 = vunpack.c.h.b16 %v1996
        %v2254 = vunpack.c.l.b16 %v1997
        %v2255 = vunpack.c.h.b16 %v1997
        %v2256 = vunpack.c.l.b16 %v1998
        %v2257 = vunpack.c.h.b16 %v1998
        %v2258 = vunpack.c.l.b16 %v1999
        %v2259 = vunpack.c.h.b16 %v1999
        %v2260 = vunpack.c.l.b16 %v2000
        %v2261 = vunpack.c.h.b16 %v2000
        %v2262 = vunpack.c.l.b16 %v2001
        %v2263 = vunpack.c.h.b16 %v2001
        %v2264 = vunpack.c.l.b16 %v2002
        %v2265 = vunpack.c.h.b16 %v2002
        %v2266 = vunpack.c.l.b16 %v2003
        %v2267 = vunpack.c.h.b16 %v2003
        %v2268 = vunpack.c.l.b16 %v2004
        %v2269 = vunpack.c.h.b16 %v2004
        %v2270 = vunpack.c.l.b16 %v2005
        %v2271 = vunpack.c.h.b16 %v2005
        %v2272 = vunpack.c.l.b16 %v2006
        %v2273 = vunpack.c.h.b16 %v2006
        %v2274 = vunpack.c.l.b16 %v2007
        %v2275 = vunpack.c.h.b16 %v2007
        %v2276 = vunpack.c.l.b16 %v2008
        %v2277 = vunpack.c.h.b16 %v2008
        %v2278 = vunpack.c.l.b16 %v2009
        %v2279 = vunpack.c.h.b16 %v2009
        %v2280 = vunpack.c.l.b16 %v2010
        %v2281 = vunpack.c.h.b16 %v2010
        %v2282 = vunpack.c.l.b16 %v2011
        %v2283 = vunpack.c.h.b16 %v2011
        %v2284 = vunpack.c.l.b16 %v2012
        %v2285 = vunpack.c.h.b16 %v2012
        %v2286 = vunpack.c.l.b16 %v2013
        %v2287 = vunpack.c.h.b16 %v2013
        %v2288 = vunpack.c.l.b16 %v2014
        %v2289 = vunpack.c.h.b16 %v2014
        %v2290 = vunpack.c.l.b16 %v2015
        %v2291 = vunpack.c.h.b16 %v2015
        %v2292 = vunpack.c.l.b16 %v2016
        %v2293 = vunpack.c.h.b16 %v2016
        %v2294 = vunpack.c.l.b16 %v2017
        %v2295 = vunpack.c.h.b16 %v2017
        %v2296 = vunpack.c.l.b16 %v2018
        %v2297 = vunpack.c.h.b16 %v2018
        %v2298 = vunpack.c.l.b16 %v2019
        %v2299 = vunpack.c.h.b16 %v2019
        %v2300 = vunpack.c.l.b16 %v2020
        %v2301 = vunpack.c.h.b16 %v2020
        %v2302 = vunpack.c.l.b16 %v2021
        %v2303 = vunpack.c.h.b16 %v2021
        %v2304 = vunpack.c.l.b16 %v2022
        %v2305 = vunpack.c.h.b16 %v2022
        %v2306 = vunpack.c.l.b16 %v2023
        %v2307 = vunpack.c.h.b16 %v2023
        %v2308 = vunpack.c.l.b16 %v2024
        %v2309 = vunpack.c.h.b16 %v2024
        %v2310 = vunpack.c.l.b16 %v2025
        %v2311 = vunpack.c.h.b16 %v2025
        %v2312 = vunpack.c.l.b16 %v2026
        %v2313 = vunpack.c.h.b16 %v2026
        %v2314 = vunpack.c.l.b16 %v2027
        %v2315 = vunpack.c.h.b16 %v2027
        %v2316 = vunpack.c.l.b16 %v2028
        %v2317 = vunpack.c.h.b16 %v2028
        %v2318 = vunpack.c.l.b16 %v2029
        %v2319 = vunpack.c.h.b16 %v2029
        %v2320 = vunpack.c.l.b16 %v2030
        %v2321 = vunpack.c.h.b16 %v2030
        %v2322 = vunpack.c.l.b16 %v2031
        %v2323 = vunpack.c.h.b16 %v2031
        %v2324 = vunpack.c.l.b16 %v2032
        %v2325 = vunpack.c.h.b16 %v2032
        %v2326 = vunpack.c.l.b16 %v2033
        %v2327 = vunpack.c.h.b16 %v2033
        %v2328 = vunpack.c.l.b16 %v2034
        %v2329 = vunpack.c.h.b16 %v2034
        %v2330 = vunpack.c.l.b16 %v2035
        %v2331 = vunpack.c.h.b16 %v2035
        %v2332 = vunpack.c.l.b16 %v2036
        %v2333 = vunpack.c.h.b16 %v2036
        %v2334 = vunpack.c.l.b16 %v2037
        %v2335 = vunpack.c.h.b16 %v2037
        %v2336 = vunpack.c.l.b16 %v2038
        %v2337 = vunpack.c.h.b16 %v2038
        %v2338 = vunpack.c.l.b16 %v2039
        %v2339 = vunpack.c.h.b16 %v2039
        %v2340 = vunpack.c.l.b16 %v2040
        %v2341 = vunpack.c.h.b16 %v2040
        %v2342 = vunpack.c.l.b16 %v2041
        %v2343 = vunpack.c.h.b16 %v2041
        %v2344 = vunpack.c.l.b16 %v2042
        %v2345 = vunpack.c.h.b16 %v2042
        %v2346 = vunpack.c.l.b16 %v2043
        %v2347 = vunpack.c.h.b16 %v2043
        %v2348 = vunpack.c.l.b16 %v2044
        %v2349 = vunpack.c.h.b16 %v2044
        %v2350 = vunpack.c.l.b16 %v2045
        %v2351 = vunpack.c.h.b16 %v2045
        %v2352 = vunpack.c.l.b16 %v2046
        %v2353 = vunpack.c.h.b16 %v2046
        %v2354 = vunpack.c.l.b16 %v2047
        %v2355 = vunpack.c.h.b16 %v2047
        %v2356 = vunpack.c.l.b16 %v2048
        %v2357 = vunpack.c.h.b16 %v2048
        %v2358 = vunpack.c.l.b16 %v2049
        %v2359 = vunpack.c.h.b16 %v2049
        %v2360 = vunpack.c.l.b16 %v2050
        %v2361 = vunpack.c.h.b16 %v2050
        %v2362 = vunpack.c.l.b16 %v2051
        %v2363 = vunpack.c.h.b16 %v2051
        %v2364 = vunpack.c.l.b16 %v2052
        %v2365 = vunpack.c.h.b16 %v2052
        %v2366 = vunpack.c.l.b16 %v2053
        %v2367 = vunpack.c.h.b16 %v2053
        %v2368 = vunpack.c.l.b16 %v2054
        %v2369 = vunpack.c.h.b16 %v2054
        %v2370 = vunpack.c.l.b16 %v2055
        %v2371 = vunpack.c.h.b16 %v2055
        %v2372 = vunpack.c.l.b16 %v2056
        %v2373 = vunpack.c.h.b16 %v2056
        %v2374 = vunpack.c.l.b16 %v2057
        %v2375 = vunpack.c.h.b16 %v2057
        %v2376 = vunpack.c.l.b16 %v2058
        %v2377 = vunpack.c.h.b16 %v2058
        %v2378 = vunpack.c.l.b16 %v2059
        %v2379 = vunpack.c.h.b16 %v2059
        %v2380 = vunpack.c.l.b16 %v2060
        %v2381 = vunpack.c.h.b16 %v2060
        %v2382 = vunpack.c.l.b16 %v2061
        %v2383 = vunpack.c.h.b16 %v2061
        %v2384 = vunpack.c.l.b16 %v2062
        %v2385 = vunpack.c.h.b16 %v2062
        %v2386 = vunpack.c.l.b16 %v2063
        %v2387 = vunpack.c.h.b16 %v2063
        %v2388 = vunpack.c.l.b16 %v2064
        %v2389 = vunpack.c.h.b16 %v2064
        %v2390 = vunpack.c.l.b16 %v2065
        %v2391 = vunpack.c.h.b16 %v2065
        %v2392 = vunpack.c.l.b16 %v2066
        %v2393 = vunpack.c.h.b16 %v2066
        %v2394 = vunpack.c.l.b16 %v2067
        %v2395 = vunpack.c.h.b16 %v2067
        %v2396 = vunpack.c.l.b16 %v2068
        %v2397 = vunpack.c.h.b16 %v2068
        %v2398 = vunpack.c.l.b16 %v2069
        %v2399 = vunpack.c.h.b16 %v2069
        %v2400 = vunpack.c.l.b16 %v2070
        %v2401 = vunpack.c.h.b16 %v2070
        %v2402 = vunpack.c.l.b16 %v2071
        %v2403 = vunpack.c.h.b16 %v2071
        %v2404 = vunpack.c.l.b16 %v2072
        %v2405 = vunpack.c.h.b16 %v2072
        %v2406 = vunpack.c.l.b16 %v2073
        %v2407 = vunpack.c.h.b16 %v2073
        %v2408 = vunpack.c.l.b16 %v2074
        %v2409 = vunpack.c.h.b16 %v2074
        %v2410 = vunpack.c.l.b16 %v2075
        %v2411 = vunpack.c.h.b16 %v2075
        %v2412 = vunpack.c.l.b16 %v2076
        %v2413 = vunpack.c.h.b16 %v2076
        %v2414 = vunpack.c.l.b16 %v2077
        %v2415 = vunpack.c.h.b16 %v2077
        %v2416 = vunpack.c.l.b16 %v2078
        %v2417 = vunpack.c.h.b16 %v2078
        %v2418 = vunpack.c.l.b16 %v2079
        %v2419 = vunpack.c.h.b16 %v2079
        %v2420 = vunpack.c.l.b16 %v2080
        %v2421 = vunpack.c.h.b16 %v2080
        %v2422 = vunpack.c.l.b16 %v2081
        %v2423 = vunpack.c.h.b16 %v2081
        %v2424 = vunpack.c.l.b16 %v2082
        %v2425 = vunpack.c.h.b16 %v2082
        %v2426 = vunpack.c.l.b16 %v2083
        %v2427 = vunpack.c.h.b16 %v2083
        %v2428 = vunpack.c.l.b16 %v2084
        %v2429 = vunpack.c.h.b16 %v2084
        %v2430 = vunpack.c.l.b16 %v2085
        %v2431 = vunpack.c.h.b16 %v2085
        %v2432 = vunpack.c.l.b16 %v2086
        %v2433 = vunpack.c.h.b16 %v2086
        %v2434 = vunpack.c.l.b16 %v2087
        %v2435 = vunpack.c.h.b16 %v2087
        %v2436 = vunpack.c.l.b16 %v2088
        %v2437 = vunpack.c.h.b16 %v2088
        %v2438 = vunpack.c.l.b16 %v2089
        %v2439 = vunpack.c.h.b16 %v2089
        %v2440 = vunpack.c.l.b16 %v2090
        %v2441 = vunpack.c.h.b16 %v2090
        %v2442 = vunpack.c.l.b16 %v2091
        %v2443 = vunpack.c.h.b16 %v2091
        %v2444 = vunpack.c.l.b16 %v2092
        %v2445 = vunpack.c.h.b16 %v2092
        %v2446 = vunpack.c.l.b16 %v2093
        %v2447 = vunpack.c.h.b16 %v2093
        %v2448 = vunpack.c.l.b16 %v2094
        %v2449 = vunpack.c.h.b16 %v2094
        %v2450 = vunpack.c.l.b16 %v2095
        %v2451 = vunpack.c.h.b16 %v2095
        %v2452 = vunpack.c.l.b16 %v2096
        %v2453 = vunpack.c.h.b16 %v2096
        %v2454 = vunpack.c.l.b16 %v2097
        %v2455 = vunpack.c.h.b16 %v2097
        %v2456 = vunpack.c.l.b16 %v2098
        %v2457 = vunpack.c.h.b16 %v2098
        %v2458 = vunpack.c.l.b16 %v2099
        %v2459 = vunpack.c.h.b16 %v2099
        %v2460 = vunpack.c.l.b16 %v2100
        %v2461 = vunpack.c.h.b16 %v2100
        %v2462 = vunpack.c.l.b16 %v2101
        %v2463 = vunpack.c.h.b16 %v2101
        %v2464 = vunpack.c.l.b16 %v2102
        %v2465 = vunpack.c.h.b16 %v2102
        %v2466 = vunpack.c.l.b16 %v2103
        %v2467 = vunpack.c.h.b16 %v2103
        %v2468 = vunpack.c.l.b16 %v2104
        %v2469 = vunpack.c.h.b16 %v2104
        %v2470 = vunpack.c.l.b16 %v2105
        %v2471 = vunpack.c.h.b16 %v2105
        %v2472 = vunpack.c.l.b16 %v2106
        %v2473 = vunpack.c.h.b16 %v2106
        %v2474 = vunpack.c.l.b16 %v2107
        %v2475 = vunpack.c.h.b16 %v2107
        %v2476 = vunpack.c.l.b16 %v2108
        %v2477 = vunpack.c.h.b16 %v2108
        %v2478 = vunpack.c.l.b16 %v2109
        %v2479 = vunpack.c.h.b16 %v2109
        %v2480 = vunpack.c.l.b16 %v2110
        %v2481 = vunpack.c.h.b16 %v2110
        %v2482 = vunpack.c.l.b16 %v2111
        %v2483 = vunpack.c.h.b16 %v2111
        %v2484 = vunpack.c.l.b16 %v2112
        %v2485 = vunpack.c.h.b16 %v2112
        %v2486 = vunpack.c.l.b16 %v2113
        %v2487 = vunpack.c.h.b16 %v2113
        %v2488 = vunpack.c.l.b16 %v2114
        %v2489 = vunpack.c.h.b16 %v2114
        %v2490 = vunpack.c.l.b16 %v2115
        %v2491 = vunpack.c.h.b16 %v2115
        %v2492 = vunpack.c.l.b16 %v2116
        %v2493 = vunpack.c.h.b16 %v2116
        %v2494 = vunpack.c.l.b16 %v2117
        %v2495 = vunpack.c.h.b16 %v2117
        %v2496 = vunpack.c.l.b16 %v2118
        %v2497 = vunpack.c.h.b16 %v2118
        %v2498 = vunpack.c.l.b16 %v2119
        %v2499 = vunpack.c.h.b16 %v2119
        %v2500 = vunpack.c.l.b16 %v2120
        %v2501 = vunpack.c.h.b16 %v2120
        %v2502 = vunpack.c.l.b16 %v2121
        %v2503 = vunpack.c.h.b16 %v2121
        %v2504 = vunpack.c.l.b16 %v2122
        %v2505 = vunpack.c.h.b16 %v2122
        %v2506 = vunpack.c.l.b16 %v2123
        %v2507 = vunpack.c.h.b16 %v2123
        %v2508 = vpack.c.b16 %v2256, %v2252
        %v2509 = vpack.c.b16 %v2257, %v2253
        %v2510 = vpack.c.b16 %v2258, %v2254
        %v2511 = vpack.c.b16 %v2259, %v2255
        %v2512 = vpack.c.b16 %v2264, %v2260
        %v2513 = vpack.c.b16 %v2265, %v2261
        %v2514 = vpack.c.b16 %v2266, %v2262
        %v2515 = vpack.c.b16 %v2267, %v2263
        %v2516 = vpack.c.b16 %v2272, %v2268
        %v2517 = vpack.c.b16 %v2273, %v2269
        %v2518 = vpack.c.b16 %v2274, %v2270
        %v2519 = vpack.c.b16 %v2275, %v2271
        %v2520 = vpack.c.b16 %v2280, %v2276
        %v2521 = vpack.c.b16 %v2281, %v2277
        %v2522 = vpack.c.b16 %v2282, %v2278
        %v2523 = vpack.c.b16 %v2283, %v2279
        %v2524 = vpack.c.b16 %v2288, %v2284
        %v2525 = vpack.c.b16 %v2289, %v2285
        %v2526 = vpack.c.b16 %v2290, %v2286
        %v2527 = vpack.c.b16 %v2291, %v2287
        %v2528 = vpack.c.b16 %v2296, %v2292
        %v2529 = vpack.c.b16 %v2297, %v2293
        %v2530 = vpack.c.b16 %v2298, %v2294
        %v2531 = vpack.c.b16 %v2299, %v2295
        %v2532 = vpack.c.b16 %v2304, %v2300
        %v2533 = vpack.c.b16 %v2305, %v2301
        %v2534 = vpack.c.b16 %v2306, %v2302
        %v2535 = vpack.c.b16 %v2307, %v2303
        %v2536 = vpack.c.b16 %v2312, %v2308
        %v2537 = vpack.c.b16 %v2313, %v2309
        %v2538 = vpack.c.b16 %v2314, %v2310
        %v2539 = vpack.c.b16 %v2315, %v2311
        %v2540 = vpack.c.b16 %v2320, %v2316
        %v2541 = vpack.c.b16 %v2321, %v2317
        %v2542 = vpack.c.b16 %v2322, %v2318
        %v2543 = vpack.c.b16 %v2323, %v2319
        %v2544 = vpack.c.b16 %v2328, %v2324
        %v2545 = vpack.c.b16 %v2329, %v2325
        %v2546 = vpack.c.b16 %v2330, %v2326
        %v2547 = vpack.c.b16 %v2331, %v2327
        %v2548 = vpack.c.b16 %v2336, %v2332
        %v2549 = vpack.c.b16 %v2337, %v2333
        %v2550 = vpack.c.b16 %v2338, %v2334
        %v2551 = vpack.c.b16 %v2339, %v2335
        %v2552 = vpack.c.b16 %v2344, %v2340
        %v2553 = vpack.c.b16 %v2345, %v2341
        %v2554 = vpack.c.b16 %v2346, %v2342
        %v2555 = vpack.c.b16 %v2347, %v2343
        %v2556 = vpack.c.b16 %v2352, %v2348
        %v2557 = vpack.c.b16 %v2353, %v2349
        %v2558 = vpack.c.b16 %v2354, %v2350
        %v2559 = vpack.c.b16 %v2355, %v2351
        %v2560 = vpack.c.b16 %v2360, %v2356
        %v2561 = vpack.c.b16 %v2361, %v2357
        %v2562 = vpack.c.b16 %v2362, %v2358
        %v2563 = vpack.c.b16 %v2363, %v2359
        %v2564 = vpack.c.b16 %v2368, %v2364
        %v2565 = vpack.c.b16 %v2369, %v2365
        %v2566 = vpack.c.b16 %v2370, %v2366
        %v2567 = vpack.c.b16 %v2371, %v2367
        %v2568 = vpack.c.b16 %v2376, %v2372
        %v2569 = vpack.c.b16 %v2377, %v2373
        %v2570 = vpack.c.b16 %v2378, %v2374
        %v2571 = vpack.c.b16 %v2379, %v2375
        %v2572 = vpack.c.b16 %v2384, %v2380
        %v2573 = vpack.c.b16 %v2385, %v2381
        %v2574 = vpack.c.b16 %v2386, %v2382
        %v2575 = vpack.c.b16 %v2387, %v2383
        %v2576 = vpack.c.b16 %v2392, %v2388
        %v2577 = vpack.c.b16 %v2393, %v2389
        %v2578 = vpack.c.b16 %v2394, %v2390
        %v2579 = vpack.c.b16 %v2395, %v2391
        %v2580 = vpack.c.b16 %v2400, %v2396
        %v2581 = vpack.c.b16 %v2401, %v2397
        %v2582 = vpack.c.b16 %v2402, %v2398
        %v2583 = vpack.c.b16 %v2403, %v2399
        %v2584 = vpack.c.b16 %v2408, %v2404
        %v2585 = vpack.c.b16 %v2409, %v2405
        %v2586 = vpack.c.b16 %v2410, %v2406
        %v2587 = vpack.c.b16 %v2411, %v2407
        %v2588 = vpack.c.b16 %v2416, %v2412
        %v2589 = vpack.c.b16 %v2417, %v2413
        %v2590 = vpack.c.b16 %v2418, %v2414
        %v2591 = vpack.c.b16 %v2419, %v2415
        %v2592 = vpack.c.b16 %v2424, %v2420
        %v2593 = vpack.c.b16 %v2425, %v2421
        %v2594 = vpack.c.b16 %v2426, %v2422
        %v2595 = vpack.c.b16 %v2427, %v2423
        %v2596 = vpack.c.b16 %v2432, %v2428
        %v2597 = vpack.c.b16 %v2433, %v2429
        %v2598 = vpack.c.b16 %v2434, %v2430
        %v2599 = vpack.c.b16 %v2435, %v2431
        %v2600 = vpack.c.b16 %v2440, %v2436
        %v2601 = vpack.c.b16 %v2441, %v2437
        %v2602 = vpack.c.b16 %v2442, %v2438
        %v2603 = vpack.c.b16 %v2443, %v2439
        %v2604 = vpack.c.b16 %v2448, %v2444
        %v2605 = vpack.c.b16 %v2449, %v2445
        %v2606 = vpack.c.b16 %v2450, %v2446
        %v2607 = vpack.c.b16 %v2451, %v2447
        %v2608 = vpack.c.b16 %v2456, %v2452
        %v2609 = vpack.c.b16 %v2457, %v2453
        %v2610 = vpack.c.b16 %v2458, %v2454
        %v2611 = vpack.c.b16 %v2459, %v2455
        %v2612 = vpack.c.b16 %v2464, %v2460
        %v2613 = vpack.c.b16 %v2465, %v2461
        %v2614 = vpack.c.b16 %v2466, %v2462
        %v2615 = vpack.c.b16 %v2467, %v2463
        %v2616 = vpack.c.b16 %v2472, %v2468
        %v2617 = vpack.c.b16 %v2473, %v2469
        %v2618 = vpack.c.b16 %v2474, %v2470
        %v2619 = vpack.c.b16 %v2475, %v2471
        %v2620 = vpack.c.b16 %v2480, %v2476
        %v2621 = vpack.c.b16 %v2481, %v2477
        %v2622 = vpack.c.b16 %v2482, %v2478
        %v2623 = vpack.c.b16 %v2483, %v2479
        %v2624 = vpack.c.b16 %v2488, %v2484
        %v2625 = vpack.c.b16 %v2489, %v2485
        %v2626 = vpack.c.b16 %v2490, %v2486
        %v2627 = vpack.c.b16 %v2491, %v2487
        %v2628 = vpack.c.b16 %v2496, %v2492
        %v2629 = vpack.c.b16 %v2497, %v2493
        %v2630 = vpack.c.b16 %v2498, %v2494
        %v2631 = vpack.c.b16 %v2499, %v2495
        %v2632 = vpack.c.b16 %v2504, %v2500
        %v2633 = vpack.c.b16 %v2505, %v2501
        %v2634 = vpack.c.b16 %v2506, %v2502
        %v2635 = vpack.c.b16 %v2507, %v2503
        %2764 = vmatpush.bf16.msra.mxu0 %v2536
        %2765 = vmatpush.bf16.msra.mxu0 %v2532
        %2766 = vmatpush.bf16.msra.mxu0 %v2528
        %2767 = vmatpush.bf16.msra.mxu0 %v2524
        %2768 = vmatpush.bf16.msra.mxu0 %v2520
        %2769 = vmatpush.bf16.msra.mxu0 %v2516
        %2770 = vmatpush.bf16.msra.mxu0 %v2512
        %2771 = vmatpush.bf16.msra.mxu0 %v2508
        %2772 = vmatmul.bf16.gmra.mxu0 %v1992
        %v2773 = vpop.f32.mrf.mxu0
        %v2774 = vadd.f32 0.0, %v2773
        %v2775 = vpop.f32.mrf.mxu0
        %2776 = vdwg.mxu0
        %2777 = vmatpush.bf16.msra.mxu0 %v2568
        %2778 = vmatpush.bf16.msra.mxu0 %v2564
        %2779 = vmatpush.bf16.msra.mxu0 %v2560
        %2780 = vmatpush.bf16.msra.mxu0 %v2556
        %2781 = vmatpush.bf16.msra.mxu0 %v2552
        %2782 = vmatpush.bf16.msra.mxu0 %v2548
        %2783 = vmatpush.bf16.msra.mxu0 %v2544
        %2784 = vmatpush.bf16.msra.mxu0 %v2540
        %2785 = vmatmul.bf16.gmra.mxu0 %v1993
        %v2786 = vpop.f32.mrf.mxu0
        %v2787 = vadd.f32 %v2774, %v2786
        %v2788 = vpop.f32.mrf.mxu0
        %2789 = vdwg.mxu0
        %2790 = vmatpush.bf16.msra.mxu0 %v2600
        %2791 = vmatpush.bf16.msra.mxu0 %v2596
        %2792 = vmatpush.bf16.msra.mxu0 %v2592
        %2793 = vmatpush.bf16.msra.mxu0 %v2588
        %2794 = vmatpush.bf16.msra.mxu0 %v2584
        %2795 = vmatpush.bf16.msra.mxu0 %v2580
        %2796 = vmatpush.bf16.msra.mxu0 %v2576
        %2797 = vmatpush.bf16.msra.mxu0 %v2572
        %2798 = vmatmul.bf16.gmra.mxu0 %v1994
        %v2799 = vpop.f32.mrf.mxu0
        %v2800 = vadd.f32 %v2787, %v2799
        %v2801 = vpop.f32.mrf.mxu0
        %2802 = vdwg.mxu0
        %2803 = vmatpush.bf16.msra.mxu0 %v2632
        %2804 = vmatpush.bf16.msra.mxu0 %v2628
        %2805 = vmatpush.bf16.msra.mxu0 %v2624
        %2806 = vmatpush.bf16.msra.mxu0 %v2620
        %2807 = vmatpush.bf16.msra.mxu0 %v2616
        %2808 = vmatpush.bf16.msra.mxu0 %v2612
        %2809 = vmatpush.bf16.msra.mxu0 %v2608
        %2810 = vmatpush.bf16.msra.mxu0 %v2604
        %2811 = vmatmul.bf16.gmra.mxu0 %v1995
        %v2812 = vpop.f32.mrf.mxu0
        %v2813 = vadd.f32 %v2800, %v2812
        %v2814 = vpop.f32.mrf.mxu0
        %2815 = vdwg.mxu0
        %2816 = vmatpush.bf16.msra.mxu0 %v2537
        %2817 = vmatpush.bf16.msra.mxu0 %v2533
        %2818 = vmatpush.bf16.msra.mxu0 %v2529
        %2819 = vmatpush.bf16.msra.mxu0 %v2525
        %2820 = vmatpush.bf16.msra.mxu0 %v2521
        %2821 = vmatpush.bf16.msra.mxu0 %v2517
        %2822 = vmatpush.bf16.msra.mxu0 %v2513
        %2823 = vmatpush.bf16.msra.mxu0 %v2509
        %2824 = vmatmul.bf16.gmra.mxu0 %v1992
        %v2825 = vpop.f32.mrf.mxu0
        %v2826 = vadd.f32 0.0, %v2825
        %v2827 = vpop.f32.mrf.mxu0
        %2828 = vdwg.mxu0
        %2829 = vmatpush.bf16.msra.mxu0 %v2569
        %2830 = vmatpush.bf16.msra.mxu0 %v2565
        %2831 = vmatpush.bf16.msra.mxu0 %v2561
        %2832 = vmatpush.bf16.msra.mxu0 %v2557
        %2833 = vmatpush.bf16.msra.mxu0 %v2553
        %2834 = vmatpush.bf16.msra.mxu0 %v2549
        %2835 = vmatpush.bf16.msra.mxu0 %v2545
        %2836 = vmatpush.bf16.msra.mxu0 %v2541
        %2837 = vmatmul.bf16.gmra.mxu0 %v1993
        %v2838 = vpop.f32.mrf.mxu0
        %v2839 = vadd.f32 %v2826, %v2838
        %v2840 = vpop.f32.mrf.mxu0
        %2841 = vdwg.mxu0
        %2842 = vmatpush.bf16.msra.mxu0 %v2601
        %2843 = vmatpush.bf16.msra.mxu0 %v2597
        %2844 = vmatpush.bf16.msra.mxu0 %v2593
        %2845 = vmatpush.bf16.msra.mxu0 %v2589
        %2846 = vmatpush.bf16.msra.mxu0 %v2585
        %2847 = vmatpush.bf16.msra.mxu0 %v2581
        %2848 = vmatpush.bf16.msra.mxu0 %v2577
        %2849 = vmatpush.bf16.msra.mxu0 %v2573
        %2850 = vmatmul.bf16.gmra.mxu0 %v1994
        %v2851 = vpop.f32.mrf.mxu0
        %v2852 = vadd.f32 %v2839, %v2851
        %v2853 = vpop.f32.mrf.mxu0
        %2854 = vdwg.mxu0
        %2855 = vmatpush.bf16.msra.mxu0 %v2633
        %2856 = vmatpush.bf16.msra.mxu0 %v2629
        %2857 = vmatpush.bf16.msra.mxu0 %v2625
        %2858 = vmatpush.bf16.msra.mxu0 %v2621
        %2859 = vmatpush.bf16.msra.mxu0 %v2617
        %2860 = vmatpush.bf16.msra.mxu0 %v2613
        %2861 = vmatpush.bf16.msra.mxu0 %v2609
        %2862 = vmatpush.bf16.msra.mxu0 %v2605
        %2863 = vmatmul.bf16.gmra.mxu0 %v1995
        %v2864 = vpop.f32.mrf.mxu0
        %v2865 = vadd.f32 %v2852, %v2864
        %v2866 = vpop.f32.mrf.mxu0
        %2867 = vdwg.mxu0
        %2868 = vmatpush.bf16.msra.mxu0 %v2538
        %2869 = vmatpush.bf16.msra.mxu0 %v2534
        %2870 = vmatpush.bf16.msra.mxu0 %v2530
        %2871 = vmatpush.bf16.msra.mxu0 %v2526
        %2872 = vmatpush.bf16.msra.mxu0 %v2522
        %2873 = vmatpush.bf16.msra.mxu0 %v2518
        %2874 = vmatpush.bf16.msra.mxu0 %v2514
        %2875 = vmatpush.bf16.msra.mxu0 %v2510
        %2876 = vmatmul.bf16.gmra.mxu0 %v1992
        %v2877 = vpop.f32.mrf.mxu0
        %v2878 = vadd.f32 0.0, %v2877
        %v2879 = vpop.f32.mrf.mxu0
        %2880 = vdwg.mxu0
        %2881 = vmatpush.bf16.msra.mxu0 %v2570
        %2882 = vmatpush.bf16.msra.mxu0 %v2566
        %2883 = vmatpush.bf16.msra.mxu0 %v2562
        %2884 = vmatpush.bf16.msra.mxu0 %v2558
        %2885 = vmatpush.bf16.msra.mxu0 %v2554
        %2886 = vmatpush.bf16.msra.mxu0 %v2550
        %2887 = vmatpush.bf16.msra.mxu0 %v2546
        %2888 = vmatpush.bf16.msra.mxu0 %v2542
        %2889 = vmatmul.bf16.gmra.mxu0 %v1993
        %v2890 = vpop.f32.mrf.mxu0
        %v2891 = vadd.f32 %v2878, %v2890
        %v2892 = vpop.f32.mrf.mxu0
        %2893 = vdwg.mxu0
        %2894 = vmatpush.bf16.msra.mxu0 %v2602
        %2895 = vmatpush.bf16.msra.mxu0 %v2598
        %2896 = vmatpush.bf16.msra.mxu0 %v2594
        %2897 = vmatpush.bf16.msra.mxu0 %v2590
        %2898 = vmatpush.bf16.msra.mxu0 %v2586
        %2899 = vmatpush.bf16.msra.mxu0 %v2582
        %2900 = vmatpush.bf16.msra.mxu0 %v2578
        %2901 = vmatpush.bf16.msra.mxu0 %v2574
        %2902 = vmatmul.bf16.gmra.mxu0 %v1994
        %v2903 = vpop.f32.mrf.mxu0
        %v2904 = vadd.f32 %v2891, %v2903
        %v2905 = vpop.f32.mrf.mxu0
        %2906 = vdwg.mxu0
        %2907 = vmatpush.bf16.msra.mxu0 %v2634
        %2908 = vmatpush.bf16.msra.mxu0 %v2630
        %2909 = vmatpush.bf16.msra.mxu0 %v2626
        %2910 = vmatpush.bf16.msra.mxu0 %v2622
        %2911 = vmatpush.bf16.msra.mxu0 %v2618
        %2912 = vmatpush.bf16.msra.mxu0 %v2614
        %2913 = vmatpush.bf16.msra.mxu0 %v2610
        %2914 = vmatpush.bf16.msra.mxu0 %v2606
        %2915 = vmatmul.bf16.gmra.mxu0 %v1995
        %v2916 = vpop.f32.mrf.mxu0
        %v2917 = vadd.f32 %v2904, %v2916
        %v2918 = vpop.f32.mrf.mxu0
        %2919 = vdwg.mxu0
        %2920 = vmatpush.bf16.msra.mxu0 %v2539
        %2921 = vmatpush.bf16.msra.mxu0 %v2535
        %2922 = vmatpush.bf16.msra.mxu0 %v2531
        %2923 = vmatpush.bf16.msra.mxu0 %v2527
        %2924 = vmatpush.bf16.msra.mxu0 %v2523
        %2925 = vmatpush.bf16.msra.mxu0 %v2519
        %2926 = vmatpush.bf16.msra.mxu0 %v2515
        %2927 = vmatpush.bf16.msra.mxu0 %v2511
        %2928 = vmatmul.bf16.gmra.mxu0 %v1992
        %v2929 = vpop.f32.mrf.mxu0
        %v2930 = vadd.f32 0.0, %v2929
        %v2931 = vpop.f32.mrf.mxu0
        %2932 = vdwg.mxu0
        %2933 = vmatpush.bf16.msra.mxu0 %v2571
        %2934 = vmatpush.bf16.msra.mxu0 %v2567
        %2935 = vmatpush.bf16.msra.mxu0 %v2563
        %2936 = vmatpush.bf16.msra.mxu0 %v2559
        %2937 = vmatpush.bf16.msra.mxu0 %v2555
        %2938 = vmatpush.bf16.msra.mxu0 %v2551
        %2939 = vmatpush.bf16.msra.mxu0 %v2547
        %2940 = vmatpush.bf16.msra.mxu0 %v2543
        %2941 = vmatmul.bf16.gmra.mxu0 %v1993
        %v2942 = vpop.f32.mrf.mxu0
        %v2943 = vadd.f32 %v2930, %v2942
        %v2944 = vpop.f32.mrf.mxu0
        %2945 = vdwg.mxu0
        %2946 = vmatpush.bf16.msra.mxu0 %v2603
        %2947 = vmatpush.bf16.msra.mxu0 %v2599
        %2948 = vmatpush.bf16.msra.mxu0 %v2595
        %2949 = vmatpush.bf16.msra.mxu0 %v2591
        %2950 = vmatpush.bf16.msra.mxu0 %v2587
        %2951 = vmatpush.bf16.msra.mxu0 %v2583
        %2952 = vmatpush.bf16.msra.mxu0 %v2579
        %2953 = vmatpush.bf16.msra.mxu0 %v2575
        %2954 = vmatmul.bf16.gmra.mxu0 %v1994
        %v2955 = vpop.f32.mrf.mxu0
        %v2956 = vadd.f32 %v2943, %v2955
        %v2957 = vpop.f32.mrf.mxu0
        %2958 = vdwg.mxu0
        %2959 = vmatpush.bf16.msra.mxu0 %v2635
        %2960 = vmatpush.bf16.msra.mxu0 %v2631
        %2961 = vmatpush.bf16.msra.mxu0 %v2627
        %2962 = vmatpush.bf16.msra.mxu0 %v2623
        %2963 = vmatpush.bf16.msra.mxu0 %v2619
        %2964 = vmatpush.bf16.msra.mxu0 %v2615
        %2965 = vmatpush.bf16.msra.mxu0 %v2611
        %2966 = vmatpush.bf16.msra.mxu0 %v2607
        %2967 = vmatmul.bf16.gmra.mxu0 %v1995
        %v2968 = vpop.f32.mrf.mxu0
        %v2969 = vadd.f32 %v2956, %v2968
        %v2970 = vpop.f32.mrf.mxu0
        %2971 = vdwg.mxu0
        %v2972 = vpack.c.bf16 %v2865, %v2813
        %v2973 = vpack.c.bf16 %v2969, %v2917
        %v2974 = vld [vmem:[#allocation10] sm:$0xf]
        %2976 = vst [vmem:[#allocation1] ss:$9 sm:$0xff] %v2974
        %v2977 = vld [vmem:[#allocation1] sm:$0xff]
        %v2978 = vld [vmem:[#allocation1 + $0x9] sm:$0xff]
        %v2979 = vld [vmem:[#allocation1 + $0x12] sm:$0xff]
        %v2980 = vld [vmem:[#allocation1 + $0x1b] sm:$0xff]
        %v2981 = vpack.i.b16 %v2977, %v2977
        %v2983 = vperm.slane %v2981, 0
        %v2984 = vpack.i.b16 %v2978, %v2978
        %v2986 = vperm.slane %v2984, 0
        %v2987 = vpack.i.b16 %v2979, %v2979
        %v2989 = vperm.slane %v2987, 0
        %v2990 = vpack.i.b16 %v2980, %v2980
        %v2992 = vperm.slane %v2990, 0
        %v2993 = vunpack.c.l.bf16 %v2972
        %v2994 = vunpack.c.h.bf16 %v2972
        %v2995 = vunpack.c.l.bf16 %v2973
        %v2996 = vunpack.c.h.bf16 %v2973
        %v2997 = vunpack.c.l.bf16 %v2983
        %v2998 = vunpack.c.l.bf16 %v2986
        %v2999 = vunpack.c.l.bf16 %v2989
        %v3000 = vunpack.c.l.bf16 %v2992
        %v3001 = vadd.f32 %v2993, %v2997
        %v3002 = vadd.f32 %v2994, %v2998
        %v3003 = vadd.f32 %v2995, %v2999
        %v3004 = vadd.f32 %v2996, %v3000
        %v3005 = vpack.c.bf16 %v3002, %v3001
        %v3006 = vpack.c.bf16 %v3004, %v3003
        %v3007 = vunpack.c.l.bf16 %v3005
        %v3008 = vunpack.c.h.bf16 %v3005
        %v3009 = vunpack.c.l.bf16 %v3006
        %v3010 = vunpack.c.h.bf16 %v3006
        %v3011 = vmax.f32 %v3007, 0.0
        %v3012 = vmax.f32 %v3008, 0.0
        %v3013 = vmax.f32 %v3009, 0.0
        %v3014 = vmax.f32 %v3010, 0.0
        %v3015 = vpack.c.bf16 %v3011, %v3011
        %v3016 = vpack.c.bf16 %v3012, %v3012
        %v3017 = vpack.c.bf16 %v3013, %v3013
        %v3018 = vpack.c.bf16 %v3014, %v3014
        %v3019 = vld [vmem:[#allocation11] sm:$0xf]
        %v3020 = vld [vmem:[#allocation11 + $0x4] sm:$0xf]
        %v3021 = vld [vmem:[#allocation11 + $0x8] sm:$0xf]
        %v3022 = vld [vmem:[#allocation11 + $0xc] sm:$0xf]
        %v3023 = vld [vmem:[#allocation11 + $0x10] sm:$0xf]
        %v3024 = vld [vmem:[#allocation11 + $0x14] sm:$0xf]
        %v3025 = vld [vmem:[#allocation11 + $0x18] sm:$0xf]
        %v3026 = vld [vmem:[#allocation11 + $0x1c] sm:$0xf]
        %v3027 = vld [vmem:[#allocation11 + $0x20] sm:$0xf]
        %v3028 = vld [vmem:[#allocation11 + $0x24] sm:$0xf]
        %v3029 = vld [vmem:[#allocation11 + $0x28] sm:$0xf]
        %v3030 = vld [vmem:[#allocation11 + $0x2c] sm:$0xf]
        %v3031 = vld [vmem:[#allocation11 + $0x30] sm:$0xf]
        %v3032 = vld [vmem:[#allocation11 + $0x34] sm:$0xf]
        %v3033 = vld [vmem:[#allocation11 + $0x38] sm:$0xf]
        %v3034 = vld [vmem:[#allocation11 + $0x3c] sm:$0xf]
        %v3035 = vld [vmem:[#allocation11 + $0x40] sm:$0xf]
        %v3036 = vld [vmem:[#allocation11 + $0x44] sm:$0xf]
        %v3037 = vld [vmem:[#allocation11 + $0x48] sm:$0xf]
        %v3038 = vld [vmem:[#allocation11 + $0x4c] sm:$0xf]
        %v3039 = vld [vmem:[#allocation11 + $0x50] sm:$0xf]
        %v3040 = vld [vmem:[#allocation11 + $0x54] sm:$0xf]
        %v3041 = vld [vmem:[#allocation11 + $0x58] sm:$0xf]
        %v3042 = vld [vmem:[#allocation11 + $0x5c] sm:$0xf]
        %v3043 = vld [vmem:[#allocation11 + $0x60] sm:$0xf]
        %v3044 = vld [vmem:[#allocation11 + $0x64] sm:$0xf]
        %v3045 = vld [vmem:[#allocation11 + $0x68] sm:$0xf]
        %v3046 = vld [vmem:[#allocation11 + $0x6c] sm:$0xf]
        %v3047 = vld [vmem:[#allocation11 + $0x70] sm:$0xf]
        %v3048 = vld [vmem:[#allocation11 + $0x74] sm:$0xf]
        %v3049 = vld [vmem:[#allocation11 + $0x78] sm:$0xf]
        %v3050 = vld [vmem:[#allocation11 + $0x7c] sm:$0xf]
        %v3051 = vld [vmem:[#allocation11 + $0x80] sm:$0xf]
        %v3052 = vld [vmem:[#allocation11 + $0x84] sm:$0xf]
        %v3053 = vld [vmem:[#allocation11 + $0x88] sm:$0xf]
        %v3054 = vld [vmem:[#allocation11 + $0x8c] sm:$0xf]
        %v3055 = vld [vmem:[#allocation11 + $0x90] sm:$0xf]
        %v3056 = vld [vmem:[#allocation11 + $0x94] sm:$0xf]
        %v3057 = vld [vmem:[#allocation11 + $0x98] sm:$0xf]
        %v3058 = vld [vmem:[#allocation11 + $0x9c] sm:$0xf]
        %v3059 = vld [vmem:[#allocation11 + $0xa0] sm:$0xf]
        %v3060 = vld [vmem:[#allocation11 + $0xa4] sm:$0xf]
        %v3061 = vld [vmem:[#allocation11 + $0xa8] sm:$0xf]
        %v3062 = vld [vmem:[#allocation11 + $0xac] sm:$0xf]
        %v3063 = vld [vmem:[#allocation11 + $0xb0] sm:$0xf]
        %v3064 = vld [vmem:[#allocation11 + $0xb4] sm:$0xf]
        %v3065 = vld [vmem:[#allocation11 + $0xb8] sm:$0xf]
        %v3066 = vld [vmem:[#allocation11 + $0xbc] sm:$0xf]
        %v3067 = vld [vmem:[#allocation11 + $0xc0] sm:$0xf]
        %v3068 = vld [vmem:[#allocation11 + $0xc4] sm:$0xf]
        %v3069 = vld [vmem:[#allocation11 + $0xc8] sm:$0xf]
        %v3070 = vld [vmem:[#allocation11 + $0xcc] sm:$0xf]
        %v3071 = vld [vmem:[#allocation11 + $0xd0] sm:$0xf]
        %v3072 = vld [vmem:[#allocation11 + $0xd4] sm:$0xf]
        %v3073 = vld [vmem:[#allocation11 + $0xd8] sm:$0xf]
        %v3074 = vld [vmem:[#allocation11 + $0xdc] sm:$0xf]
        %v3075 = vld [vmem:[#allocation11 + $0xe0] sm:$0xf]
        %v3076 = vld [vmem:[#allocation11 + $0xe4] sm:$0xf]
        %v3077 = vld [vmem:[#allocation11 + $0xe8] sm:$0xf]
        %v3078 = vld [vmem:[#allocation11 + $0xec] sm:$0xf]
        %v3079 = vld [vmem:[#allocation11 + $0xf0] sm:$0xf]
        %v3080 = vld [vmem:[#allocation11 + $0xf4] sm:$0xf]
        %v3081 = vld [vmem:[#allocation11 + $0xf8] sm:$0xf]
        %v3082 = vld [vmem:[#allocation11 + $0xfc] sm:$0xf]
        %v3083 = vld [vmem:[%s6] sm:$0x1]
        %v3085 = vperm.slane %v3083, 0
        %v3151 = vunpack.c.l.b16 %v3019
        %v3152 = vunpack.c.l.b16 %v3020
        %v3153 = vunpack.c.l.b16 %v3021
        %v3154 = vunpack.c.l.b16 %v3022
        %v3155 = vunpack.c.l.b16 %v3023
        %v3156 = vunpack.c.l.b16 %v3024
        %v3157 = vunpack.c.l.b16 %v3025
        %v3158 = vunpack.c.l.b16 %v3026
        %v3159 = vunpack.c.l.b16 %v3027
        %v3160 = vunpack.c.l.b16 %v3028
        %v3161 = vunpack.c.l.b16 %v3029
        %v3162 = vunpack.c.l.b16 %v3030
        %v3163 = vunpack.c.l.b16 %v3031
        %v3164 = vunpack.c.l.b16 %v3032
        %v3165 = vunpack.c.l.b16 %v3033
        %v3166 = vunpack.c.l.b16 %v3034
        %v3167 = vunpack.c.l.b16 %v3035
        %v3168 = vunpack.c.l.b16 %v3036
        %v3169 = vunpack.c.l.b16 %v3037
        %v3170 = vunpack.c.l.b16 %v3038
        %v3171 = vunpack.c.l.b16 %v3039
        %v3172 = vunpack.c.l.b16 %v3040
        %v3173 = vunpack.c.l.b16 %v3041
        %v3174 = vunpack.c.l.b16 %v3042
        %v3175 = vunpack.c.l.b16 %v3043
        %v3176 = vunpack.c.l.b16 %v3044
        %v3177 = vunpack.c.l.b16 %v3045
        %v3178 = vunpack.c.l.b16 %v3046
        %v3179 = vunpack.c.l.b16 %v3047
        %v3180 = vunpack.c.l.b16 %v3048
        %v3181 = vunpack.c.l.b16 %v3049
        %v3182 = vunpack.c.l.b16 %v3050
        %v3183 = vunpack.c.l.b16 %v3051
        %v3184 = vunpack.c.l.b16 %v3052
        %v3185 = vunpack.c.l.b16 %v3053
        %v3186 = vunpack.c.l.b16 %v3054
        %v3187 = vunpack.c.l.b16 %v3055
        %v3188 = vunpack.c.l.b16 %v3056
        %v3189 = vunpack.c.l.b16 %v3057
        %v3190 = vunpack.c.l.b16 %v3058
        %v3191 = vunpack.c.l.b16 %v3059
        %v3192 = vunpack.c.l.b16 %v3060
        %v3193 = vunpack.c.l.b16 %v3061
        %v3194 = vunpack.c.l.b16 %v3062
        %v3195 = vunpack.c.l.b16 %v3063
        %v3196 = vunpack.c.l.b16 %v3064
        %v3197 = vunpack.c.l.b16 %v3065
        %v3198 = vunpack.c.l.b16 %v3066
        %v3199 = vunpack.c.l.b16 %v3067
        %v3200 = vunpack.c.l.b16 %v3068
        %v3201 = vunpack.c.l.b16 %v3069
        %v3202 = vunpack.c.l.b16 %v3070
        %v3203 = vunpack.c.l.b16 %v3071
        %v3204 = vunpack.c.l.b16 %v3072
        %v3205 = vunpack.c.l.b16 %v3073
        %v3206 = vunpack.c.l.b16 %v3074
        %v3207 = vunpack.c.l.b16 %v3075
        %v3208 = vunpack.c.l.b16 %v3076
        %v3209 = vunpack.c.l.b16 %v3077
        %v3210 = vunpack.c.l.b16 %v3078
        %v3211 = vunpack.c.l.b16 %v3079
        %v3212 = vunpack.c.l.b16 %v3080
        %v3213 = vunpack.c.l.b16 %v3081
        %v3214 = vunpack.c.l.b16 %v3082
        %v3215 = vpack.c.b16 %v3152, %v3151
        %v3216 = vpack.c.b16 %v3154, %v3153
        %v3217 = vpack.c.b16 %v3156, %v3155
        %v3218 = vpack.c.b16 %v3158, %v3157
        %v3219 = vpack.c.b16 %v3160, %v3159
        %v3220 = vpack.c.b16 %v3162, %v3161
        %v3221 = vpack.c.b16 %v3164, %v3163
        %v3222 = vpack.c.b16 %v3166, %v3165
        %v3223 = vpack.c.b16 %v3168, %v3167
        %v3224 = vpack.c.b16 %v3170, %v3169
        %v3225 = vpack.c.b16 %v3172, %v3171
        %v3226 = vpack.c.b16 %v3174, %v3173
        %v3227 = vpack.c.b16 %v3176, %v3175
        %v3228 = vpack.c.b16 %v3178, %v3177
        %v3229 = vpack.c.b16 %v3180, %v3179
        %v3230 = vpack.c.b16 %v3182, %v3181
        %v3231 = vpack.c.b16 %v3184, %v3183
        %v3232 = vpack.c.b16 %v3186, %v3185
        %v3233 = vpack.c.b16 %v3188, %v3187
        %v3234 = vpack.c.b16 %v3190, %v3189
        %v3235 = vpack.c.b16 %v3192, %v3191
        %v3236 = vpack.c.b16 %v3194, %v3193
        %v3237 = vpack.c.b16 %v3196, %v3195
        %v3238 = vpack.c.b16 %v3198, %v3197
        %v3239 = vpack.c.b16 %v3200, %v3199
        %v3240 = vpack.c.b16 %v3202, %v3201
        %v3241 = vpack.c.b16 %v3204, %v3203
        %v3242 = vpack.c.b16 %v3206, %v3205
        %v3243 = vpack.c.b16 %v3208, %v3207
        %v3244 = vpack.c.b16 %v3210, %v3209
        %v3245 = vpack.c.b16 %v3212, %v3211
        %v3246 = vpack.c.b16 %v3214, %v3213
        %3279 = vmatpush.bf16.msra.mxu0 %v3222
        %3280 = vmatpush.bf16.msra.mxu0 %v3221
        %3281 = vmatpush.bf16.msra.mxu0 %v3220
        %3282 = vmatpush.bf16.msra.mxu0 %v3219
        %3283 = vmatpush.bf16.msra.mxu0 %v3218
        %3284 = vmatpush.bf16.msra.mxu0 %v3217
        %3285 = vmatpush.bf16.msra.mxu0 %v3216
        %3286 = vmatpush.bf16.msra.mxu0 %v3215
        %3287 = vmatmul.bf16.gmra.mxu0 %v3015
        %v3288 = vpop.f32.mrf.mxu0
        %v3289 = vadd.f32 %v3085, %v3288
        %v3290 = vpop.f32.mrf.mxu0
        %3291 = vdwg.mxu0
        %3292 = vmatpush.bf16.msra.mxu0 %v3230
        %3293 = vmatpush.bf16.msra.mxu0 %v3229
        %3294 = vmatpush.bf16.msra.mxu0 %v3228
        %3295 = vmatpush.bf16.msra.mxu0 %v3227
        %3296 = vmatpush.bf16.msra.mxu0 %v3226
        %3297 = vmatpush.bf16.msra.mxu0 %v3225
        %3298 = vmatpush.bf16.msra.mxu0 %v3224
        %3299 = vmatpush.bf16.msra.mxu0 %v3223
        %3300 = vmatmul.bf16.gmra.mxu0 %v3016
        %v3301 = vpop.f32.mrf.mxu0
        %v3302 = vadd.f32 %v3289, %v3301
        %v3303 = vpop.f32.mrf.mxu0
        %3304 = vdwg.mxu0
        %3305 = vmatpush.bf16.msra.mxu0 %v3238
        %3306 = vmatpush.bf16.msra.mxu0 %v3237
        %3307 = vmatpush.bf16.msra.mxu0 %v3236
        %3308 = vmatpush.bf16.msra.mxu0 %v3235
        %3309 = vmatpush.bf16.msra.mxu0 %v3234
        %3310 = vmatpush.bf16.msra.mxu0 %v3233
        %3311 = vmatpush.bf16.msra.mxu0 %v3232
        %3312 = vmatpush.bf16.msra.mxu0 %v3231
        %3313 = vmatmul.bf16.gmra.mxu0 %v3017
        %v3314 = vpop.f32.mrf.mxu0
        %v3315 = vadd.f32 %v3302, %v3314
        %v3316 = vpop.f32.mrf.mxu0
        %3317 = vdwg.mxu0
        %3318 = vmatpush.bf16.msra.mxu0 %v3246
        %3319 = vmatpush.bf16.msra.mxu0 %v3245
        %3320 = vmatpush.bf16.msra.mxu0 %v3244
        %3321 = vmatpush.bf16.msra.mxu0 %v3243
        %3322 = vmatpush.bf16.msra.mxu0 %v3242
        %3323 = vmatpush.bf16.msra.mxu0 %v3241
        %3324 = vmatpush.bf16.msra.mxu0 %v3240
        %3325 = vmatpush.bf16.msra.mxu0 %v3239
        %3326 = vmatmul.bf16.gmra.mxu0 %v3018
        %v3327 = vpop.f32.mrf.mxu0
        %v3328 = vadd.f32 %v3315, %v3327
        %v3329 = vpop.f32.mrf.mxu0
        %3330 = vdwg.mxu0
        %3331 = vst [vmem:[%s375] sm:$0xff] %v3328
        %s3332 = sand.u32 %s187, 1
        %s3333 = scalar_lea.sflag [#allocation4], %s3332
        %s3334 = sand.u32 %s187, 1
        %s3335 = smul.addr %s3334, 8
        %s3336 = scalar_lea.vmem [#allocation13], %s3335
        // Predicated region
        $region73: #{tpu_custom_call.1} parent=47 // pred_check
          %p3337 = pneg %p197
        $region74: #{tpu_custom_call.1} parent=47 // pred_check_branch
          %3339 = sbr.rel (%p3337) target = $region76
        $region75: #{tpu_custom_call.1} parent=47 // pred_region
          %3341 = vsyncadd %s3333, 0
          %s3342 = smul.addr %s27, 8
          %s3343 = scalar_lea.hbm %s7, %s3342
          %s3345 = sshll.u32 %s3336, 4
          %s3346 = int_to_ptr.vmem [resolvable:$true] %s3345
          %s3347 = sshll.u32 %s3343, 4
          %s3348 = int_to_ptr.hbm [resolvable:$true] %s3347
          %3350 = dma.vmem_to_hbm [thread:$0]  %s3346, 128, %s3348, %s3333
        $region76: #{tpu_custom_call.1} parent=47 // pred_fallthru
          _
      $region48: #{tpu_custom_call.1} parent=5 // pred_fallthru
        _
      %p3351 = scmp.le.s32.totalorder 2, %s22
      // Predicated region
      $region77: #{tpu_custom_call.1} parent=5 // pred_check
        %p3352 = pneg %p3351
      $region78: #{tpu_custom_call.1} parent=5 // pred_check_branch
        %3354 = sbr.rel (%p3352) target = $region80
      $region79: #{tpu_custom_call.1} parent=5 // pred_region
        %s3355 = ssub.s32 %s22, 2
        // Predicated region
        $region81: #{tpu_custom_call.1} parent=79 // pred_check
          %p3356 = pneg %p203
        $region82: #{tpu_custom_call.1} parent=79 // pred_check_branch
          %3358 = sbr.rel (%p3356) target = $region84
        $region83: #{tpu_custom_call.1} parent=79 // pred_region
          %s3359 = sand.u32 %s188, 1
          %s3360 = scalar_lea.sflag [#allocation4], %s3359
          %s3361 = sand.u32 %s188, 1
          %s3362 = smul.addr %s3361, 8
          %s3363 = scalar_lea.vmem [#allocation13], %s3362
          %3365 = dma.done %s3360, 128
        $region84: #{tpu_custom_call.1} parent=79 // pred_fallthru
          _
      $region80: #{tpu_custom_call.1} parent=5 // pred_fallthru
        _
    $region6: #{tpu_custom_call.1} parent=1 // loop_footer
      %s26 = sadd.s32 1, %s22
    $region7: #{tpu_custom_call.1} parent=1 // loop_footer_branch
      %21 = sbr.rel target = $region3
    $region8: #{tpu_custom_call.1} parent=1 // loop_exit
      _
    %3366 = vsyncpa [#allocation3], 1
    %s3367 = scalar_lea.sflag [#allocation3], 1
    %3368 = vsyncpa %s3367, 1
    %3369 = vsyncpa [#allocation6], 1
    %3370 = vsyncpa [#allocation9], 1
    %3371 = vsyncpa [#allocation12], 1
    %3372 = vsyncpa [#allocation4], 1
    %s3373 = scalar_lea.sflag [#allocation4], 1
    %3374 = vsyncpa %s3373, 1

</llo_original>
